<compile_context>
chip_gen: v7x
topology: tpu7x:2x2x1
jax: 0.10.0
libtpu: 0.0.40
codegen_flags: <defaults>
</compile_context>

<pallas_src>
import jax
import jax.numpy as jnp
from jax.experimental import pallas as pl
from jax.experimental.pallas import tpu as pltpu

BN_EPS = 1e-5


def _padded_channels(c):
    """Pad conv1's input-channel count up to a multiple of 8 (min 8)."""
    return max(8, ((c + 7) // 8) * 8)


def _pick_point_tile(n, preferred=512):
    """Largest power-of-two point tile <= `preferred` that divides n."""
    best = None
    for t in (8, 16, 32, 64, 128, 256, 512, 1024):
        if t <= preferred and n % t == 0:
            best = t
    return best if best is not None else n  # fall back: whole axis in one tile


# --------------------------------------------------------------------------
# Kernel 1: conv1-3 (1x1) + folded BN + ReLU, streaming global max-pool.
# Grid = (B, num_point_tiles); the pooled output block is resident across the
# point-tile axis and doubles as the running-max accumulator.
# --------------------------------------------------------------------------
def point_feature_kernel(x_ref,
                         w1_ref, s1_ref, t1_ref,
                         w2_ref, s2_ref, t2_ref,
                         w3_ref, s3_ref, t3_ref,
                         pooled_ref):
    nt = pl.program_id(1)

    @pl.when(nt == 0)
    def _init():
        # ReLU makes every feature >= 0, so zero-init is exact for the max.
        pooled_ref[...] = jnp.zeros_like(pooled_ref)

    x = x_ref[0]                                          # (TN, C_pad) bf16

    # conv1 (1x1) + bn1 + relu -> (TN, 64)
    h = jnp.dot(x, w1_ref[...], preferred_element_type=jnp.float32)
    h = jnp.maximum(h * s1_ref[...] + t1_ref[...], 0.0)
    # conv2 (1x1) + bn2 + relu -> (TN, 128)
    h = jnp.dot(h.astype(jnp.bfloat16), w2_ref[...],
                preferred_element_type=jnp.float32)
    h = jnp.maximum(h * s2_ref[...] + t2_ref[...], 0.0)
    # conv3 (1x1) + bn3 + relu -> (TN, 1024)
    h = jnp.dot(h.astype(jnp.bfloat16), w3_ref[...],
                preferred_element_type=jnp.float32)
    h = jnp.maximum(h * s3_ref[...] + t3_ref[...], 0.0)

    # TODO(synk): the reference forward feeds (B,1024,N) straight into
    # BatchNorm2d(1024) / Linear(1024,512), which is shape-inconsistent and
    # errors in PyTorch; we apply the canonical PointNet STN3d global
    # max-pool over points so the FC head is well-defined.
    pooled_ref[0] = jnp.maximum(pooled_ref[0],
                                jnp.max(h, axis=0, keepdims=True))


# --------------------------------------------------------------------------
# Kernel 2: batched FC head (fc1/fc2/fc3 + folded BN + ReLU) for all of B.
# --------------------------------------------------------------------------
def fc_head_kernel(g_ref,
                   w4_ref, s4_ref, t4_ref,
                   w5_ref, s5_ref, t5_ref,
                   w6_ref, b6_ref,
                   out_ref):
    g = g_ref[...]                                        # (B, 1024) f32
    h = jnp.dot(g.astype(jnp.bfloat16), w4_ref[...],
                preferred_element_type=jnp.float32)
    h = jnp.maximum(h * s4_ref[...] + t4_ref[...], 0.0)
    h = jnp.dot(h.astype(jnp.bfloat16), w5_ref[...],
                preferred_element_type=jnp.float32)
    h = jnp.maximum(h * s5_ref[...] + t5_ref[...], 0.0)
    # fc3: the flattened 3x3 identity is already folded into b6.
    out_ref[...] = jnp.dot(h.astype(jnp.bfloat16), w6_ref[...],
                           preferred_element_type=jnp.float32) + b6_ref[...]


# --------------------------------------------------------------------------
# Wrapper
# --------------------------------------------------------------------------
def tnet3d_forward(x_ncw, params, *, point_tile=512):
    """x_ncw: (B, C, N) float32 (PyTorch Conv1d layout). Returns (B, 3, 3)."""
    (w1, s1, t1, w2, s2, t2, w3, s3, t3,
     w4, s4, t4, w5, s5, t5, w6, b6) = params
    B, C, N = x_ncw.shape
    c_pad = w1.shape[0]

    # Layout plumbing: channels onto lanes, pad C -> c_pad, bf16 MXU operand.
    x = jnp.transpose(x_ncw, (0, 2, 1))                   # (B, N, C)
    x = jnp.pad(x, ((0, 0), (0, 0), (0, c_pad - C))).astype(jnp.bfloat16)

    tn = _pick_point_tile(N, point_tile)
    grid = (B, N // tn)

    def const_spec(a):
        # Weights / scale / shift: same block every grid step.
        return pl.BlockSpec(a.shape, lambda b, n, _nd=a.ndim: (0,) * _nd)

    pooled = pl.pallas_call(
        point_feature_kernel,
        out_shape=jax.ShapeDtypeStruct((B, 1, 1024), jnp.float32),
        grid=grid,
        in_specs=[pl.BlockSpec((1, tn, c_pad), lambda b, n: (b, n, 0))]
                 + [const_spec(p) for p in (w1, s1, t1, w2, s2, t2, w3, s3, t3)],
        out_specs=pl.BlockSpec((1, 1, 1024), lambda b, n: (b, 0, 0)),
        compiler_params=pltpu.CompilerParams(
            dimension_semantics=("parallel", "arbitrary"),
            # Real footprint (bf16 weights ~0.3 MiB double-buffered + one
            # point tile of activations) is a few MiB; 32 MiB is safe on
            # v5e/v6e/v7x and leaves room for large point tiles.
            vmem_limit_bytes=32 * 1024 * 1024,
        ),
    )(x, w1, s1, t1, w2, s2, t2, w3, s3, t3)

    # Batched FC head: one invocation, full arrays resident in VMEM.
    out = pl.pallas_call(
        fc_head_kernel,
        out_shape=jax.ShapeDtypeStruct((B, 9), jnp.float32),
    )(pooled.reshape(B, 1024), w4, s4, t4, w5, s5, t5, w6, b6)

    return out.reshape(B, 3, 3)


# --------------------------------------------------------------------------
# Parameter construction (deterministic synthetic weights, TNet3d shapes).
# Conv/FC weights stored (C_in, C_out) in bf16; conv/fc bias + BatchNorm
# (gamma, beta, mean, var, eps) folded into f32 per-channel (scale, shift).
# --------------------------------------------------------------------------
def init_params(key, channel):
    dims = [(channel, 64), (64, 128), (128, 1024), (1024, 512), (512, 256)]
    keys = jax.random.split(key, 6 * len(dims) + 2)
    ki = 0
    params = []
    for li, (cin, cout) in enumerate(dims):
        w = jax.random.normal(keys[ki], (cin, cout), jnp.float32) / jnp.sqrt(cin)
        ki += 1
        b = 0.1 * jax.random.normal(keys[ki], (cout,), jnp.float32); ki += 1
        gamma = 1.0 + 0.1 * jax.random.normal(keys[ki], (cout,), jnp.float32); ki += 1
        beta = 0.05 * jax.random.normal(keys[ki], (cout,), jnp.float32); ki += 1
        mean = 0.01 * jax.random.normal(keys[ki], (cout,), jnp.float32); ki += 1
        var = 0.9 + 0.2 * jax.random.uniform(keys[ki], (cout,), jnp.float32); ki += 1
        scale = gamma / jnp.sqrt(var + BN_EPS)          # BN inference form
        shift = (b - mean) * scale + beta               # folds conv/fc bias
        if li == 0:
            # Zero-pad conv1 input channels so x tiles avoid K=3 MXU passes.
            w = jnp.pad(w, ((0, _padded_channels(cin) - cin), (0, 0)))
        params += [w.astype(jnp.bfloat16),
                   scale.reshape(1, cout), shift.reshape(1, cout)]
    w6 = jax.random.normal(keys[ki], (256, 9), jnp.float32) / jnp.sqrt(256.0); ki += 1
    b6 = 0.1 * jax.random.normal(keys[ki], (1, 9), jnp.float32); ki += 1
    # Fold the flattened 3x3 identity added in the reference forward into b6.
    b6 = b6 + jnp.eye(3, dtype=jnp.float32).reshape(1, 9)
    params += [w6.astype(jnp.bfloat16), b6]
    return tuple(params)


# --------------------------------------------------------------------------
# Pure-JAX reference mirroring the kernel math (same bf16 operand casts).
# --------------------------------------------------------------------------
def tnet3d_reference(x_ncw, params):
    (w1, s1, t1, w2, s2, t2, w3, s3, t3,
     w4, s4, t4, w5, s5, t5, w6, b6) = params
    B, C, N = x_ncw.shape
    c_pad = w1.shape[0]
    x = jnp.transpose(x_ncw, (0, 2, 1))
    x = jnp.pad(x, ((0, 0), (0, 0), (0, c_pad - C))).astype(jnp.bfloat16)

    def mm(a, w):
        return jnp.dot(a.astype(jnp.bfloat16), w,
                       preferred_element_type=jnp.float32)

    h = jnp.maximum(mm(x, w1) * s1 + t1, 0.0)
    h = jnp.maximum(mm(h, w2) * s2 + t2, 0.0)
    h = jnp.maximum(mm(h, w3) * s3 + t3, 0.0)
    g = jnp.max(h, axis=1)                               # global max-pool
    g = jnp.maximum(mm(g, w4) * s4 + t4, 0.0)
    g = jnp.maximum(mm(g, w5) * s5 + t5, 0.0)
    g = mm(g, w6) + b6
    return g.reshape(B, 3, 3)


if __name__ == "__main__":
    key = jax.random.PRNGKey(0)
    xk, pk = jax.random.split(key)

    B, C, N = 2, 3, 512                      # batch, xyz channels, points
    x_ncw = jax.random.normal(xk, (B, C, N), dtype=jnp.float32)
    params = init_params(pk, channel=C)

    # point_tile=128 -> 4 point tiles per batch element (exercises the
    # streaming max-pool accumulation path).
    out = tnet3d_forward(x_ncw, params, point_tile=128)
    out = jax.block_until_ready(out)

    assert out.shape == (B, 3, 3) and out.dtype == jnp.float32
    assert bool(jnp.all(jnp.isfinite(out)))
    ref = tnet3d_reference(x_ncw, params)
    err = float(jnp.max(jnp.abs(out - ref)))
    assert err < 5e-2, f"mismatch vs reference: max abs err = {err}"
    print("KERNEL_OK")
</pallas_src>

<mosaic_0001>
module attributes {stable_mosaic.version = 11 : i64} {
  func.func @point_feature_kernel(%arg0: i32, %arg1: i32, %arg2: memref<1x128x8xbf16, #tpu.memory_space<vmem>>, %arg3: memref<8x64xbf16, #tpu.memory_space<vmem>>, %arg4: memref<1x64xf32, #tpu.memory_space<vmem>>, %arg5: memref<1x64xf32, #tpu.memory_space<vmem>>, %arg6: memref<64x128xbf16, #tpu.memory_space<vmem>>, %arg7: memref<1x128xf32, #tpu.memory_space<vmem>>, %arg8: memref<1x128xf32, #tpu.memory_space<vmem>>, %arg9: memref<128x1024xbf16, #tpu.memory_space<vmem>>, %arg10: memref<1x1024xf32, #tpu.memory_space<vmem>>, %arg11: memref<1x1024xf32, #tpu.memory_space<vmem>>, %arg12: memref<1x1x1024xf32, #tpu.memory_space<vmem>>) attributes {dimension_semantics = [#tpu.dimension_semantics<parallel>, #tpu.dimension_semantics<arbitrary>], iteration_bounds = array<i64: 2, 4>, scalar_prefetch = 0 : i64, scratch_operands = 0 : i64, tpu.core_type = #tpu.core_type<tc>, window_params = [{transform_indices = @transform_0, window_bounds = array<i64: 1, 128, 8>}, {pipeline_mode = #tpu.pipeline_mode<synchronous>, transform_indices = @transform_1, window_bounds = array<i64: 8, 64>}, {pipeline_mode = #tpu.pipeline_mode<synchronous>, transform_indices = @transform_2, window_bounds = array<i64: 1, 64>}, {pipeline_mode = #tpu.pipeline_mode<synchronous>, transform_indices = @transform_3, window_bounds = array<i64: 1, 64>}, {pipeline_mode = #tpu.pipeline_mode<synchronous>, transform_indices = @transform_4, window_bounds = array<i64: 64, 128>}, {pipeline_mode = #tpu.pipeline_mode<synchronous>, transform_indices = @transform_5, window_bounds = array<i64: 1, 128>}, {pipeline_mode = #tpu.pipeline_mode<synchronous>, transform_indices = @transform_6, window_bounds = array<i64: 1, 128>}, {pipeline_mode = #tpu.pipeline_mode<synchronous>, transform_indices = @transform_7, window_bounds = array<i64: 128, 1024>}, {pipeline_mode = #tpu.pipeline_mode<synchronous>, transform_indices = @transform_8, window_bounds = array<i64: 1, 1024>}, {pipeline_mode = #tpu.pipeline_mode<synchronous>, transform_indices = @transform_9, window_bounds = array<i64: 1, 1024>}, {transform_indices = @transform_10, window_bounds = array<i64: 1, 1, 1024>}]} {
    %c0_i32 = arith.constant 0 : i32
    %0 = arith.cmpi eq, %arg1, %c0_i32 : i32
    %1 = arith.extui %0 : i1 to i32
    %c0_i32_0 = arith.constant 0 : i32
    %2 = arith.cmpi ne, %1, %c0_i32_0 : i32
    scf.if %2 {
      %cst_33 = arith.constant 0.000000e+00 : f32
      %45 = vector.broadcast %cst_33 : f32 to vector<1x1x1024xf32>
      %c0_34 = arith.constant 0 : index
      %c0_35 = arith.constant 0 : index
      %c0_36 = arith.constant 0 : index
      %46 = vector.load %arg12[%c0_34, %c0_35, %c0_36] : memref<1x1x1024xf32, #tpu.memory_space<vmem>>, vector<1x1x1024xf32>
      tpu.vector_store %arg12[%c0_34, %c0_35, %c0_36], %45 {strides = array<i32>} : memref<1x1x1024xf32, #tpu.memory_space<vmem>>, vector<1x1x1024xf32>,
    } else {
    }
    %c0 = arith.constant 0 : index
    %c0_1 = arith.constant 0 : index
    %c0_2 = arith.constant 0 : index
    %3 = vector.load %arg2[%c0, %c0_1, %c0_2] : memref<1x128x8xbf16, #tpu.memory_space<vmem>>, vector<1x128x8xbf16>
    %4 = vector.shape_cast %3 : vector<1x128x8xbf16> to vector<128x8xbf16>
    %c0_3 = arith.constant 0 : index
    %c0_4 = arith.constant 0 : index
    %5 = vector.load %arg3[%c0_3, %c0_4] : memref<8x64xbf16, #tpu.memory_space<vmem>>, vector<8x64xbf16>
    %cst = arith.constant dense<0.000000e+00> : vector<128x64xf32>
    %6 = tpu.matmul %4, %5, %cst {dimension_numbers = #tpu.dot_dimension_numbers<[1], [0], [0], [1], [0, 0, 1, 1], [], []>} : vector<128x8xbf16>, vector<8x64xbf16>, vector<128x64xf32> -> vector<128x64xf32>
    %c0_5 = arith.constant 0 : index
    %c0_6 = arith.constant 0 : index
    %7 = vector.load %arg4[%c0_5, %c0_6] : memref<1x64xf32, #tpu.memory_space<vmem>>, vector<1x64xf32>
    %8 = vector.broadcast %7 : vector<1x64xf32> to vector<128x64xf32>
    %9 = arith.mulf %6, %8 : vector<128x64xf32>
    %c0_7 = arith.constant 0 : index
    %c0_8 = arith.constant 0 : index
    %10 = vector.load %arg5[%c0_7, %c0_8] : memref<1x64xf32, #tpu.memory_space<vmem>>, vector<1x64xf32>
    %11 = vector.broadcast %10 : vector<1x64xf32> to vector<128x64xf32>
    %12 = arith.addf %9, %11 : vector<128x64xf32>
    %cst_9 = arith.constant 0.000000e+00 : f32
    %13 = vector.broadcast %cst_9 : f32 to vector<128x64xf32>
    %14 = arith.maximumf %12, %13 : vector<128x64xf32>
    %15 = arith.truncf %14 : vector<128x64xf32> to vector<128x64xbf16>
    %c0_10 = arith.constant 0 : index
    %c0_11 = arith.constant 0 : index
    %16 = vector.load %arg6[%c0_10, %c0_11] : memref<64x128xbf16, #tpu.memory_space<vmem>>, vector<64x128xbf16>
    %cst_12 = arith.constant dense<0.000000e+00> : vector<128x128xf32>
    %17 = tpu.matmul %15, %16, %cst_12 {dimension_numbers = #tpu.dot_dimension_numbers<[1], [0], [0], [1], [0, 0, 1, 1], [], []>} : vector<128x64xbf16>, vector<64x128xbf16>, vector<128x128xf32> -> vector<128x128xf32>
    %c0_13 = arith.constant 0 : index
    %c0_14 = arith.constant 0 : index
    %18 = vector.load %arg7[%c0_13, %c0_14] : memref<1x128xf32, #tpu.memory_space<vmem>>, vector<1x128xf32>
    %19 = vector.broadcast %18 : vector<1x128xf32> to vector<128x128xf32>
    %20 = arith.mulf %17, %19 : vector<128x128xf32>
    %c0_15 = arith.constant 0 : index
    %c0_16 = arith.constant 0 : index
    %21 = vector.load %arg8[%c0_15, %c0_16] : memref<1x128xf32, #tpu.memory_space<vmem>>, vector<1x128xf32>
    %22 = vector.broadcast %21 : vector<1x128xf32> to vector<128x128xf32>
    %23 = arith.addf %20, %22 : vector<128x128xf32>
    %cst_17 = arith.constant 0.000000e+00 : f32
    %24 = vector.broadcast %cst_17 : f32 to vector<128x128xf32>
    %25 = arith.maximumf %23, %24 : vector<128x128xf32>
    %26 = arith.truncf %25 : vector<128x128xf32> to vector<128x128xbf16>
    %c0_18 = arith.constant 0 : index
    %c0_19 = arith.constant 0 : index
    %27 = vector.load %arg9[%c0_18, %c0_19] : memref<128x1024xbf16, #tpu.memory_space<vmem>>, vector<128x1024xbf16>
    %cst_20 = arith.constant dense<0.000000e+00> : vector<128x1024xf32>
    %28 = tpu.matmul %26, %27, %cst_20 {dimension_numbers = #tpu.dot_dimension_numbers<[1], [0], [0], [1], [0, 0, 1, 1], [], []>} : vector<128x128xbf16>, vector<128x1024xbf16>, vector<128x1024xf32> -> vector<128x1024xf32>
    %c0_21 = arith.constant 0 : index
    %c0_22 = arith.constant 0 : index
    %29 = vector.load %arg10[%c0_21, %c0_22] : memref<1x1024xf32, #tpu.memory_space<vmem>>, vector<1x1024xf32>
    %30 = vector.broadcast %29 : vector<1x1024xf32> to vector<128x1024xf32>
    %31 = arith.mulf %28, %30 : vector<128x1024xf32>
    %c0_23 = arith.constant 0 : index
    %c0_24 = arith.constant 0 : index
    %32 = vector.load %arg11[%c0_23, %c0_24] : memref<1x1024xf32, #tpu.memory_space<vmem>>, vector<1x1024xf32>
    %33 = vector.broadcast %32 : vector<1x1024xf32> to vector<128x1024xf32>
    %34 = arith.addf %31, %33 : vector<128x1024xf32>
    %cst_25 = arith.constant 0.000000e+00 : f32
    %35 = vector.broadcast %cst_25 : f32 to vector<128x1024xf32>
    %36 = arith.maximumf %34, %35 : vector<128x1024xf32>
    %c0_26 = arith.constant 0 : index
    %c0_27 = arith.constant 0 : index
    %c0_28 = arith.constant 0 : index
    %37 = vector.load %arg12[%c0_26, %c0_27, %c0_28] : memref<1x1x1024xf32, #tpu.memory_space<vmem>>, vector<1x1x1024xf32>
    %38 = vector.shape_cast %37 : vector<1x1x1024xf32> to vector<1x1024xf32>
    %cst_29 = arith.constant dense<0xFF800000> : vector<1024xf32>
    %39 = vector.multi_reduction <maximumf>, %36, %cst_29 [0] : vector<128x1024xf32> to vector<1024xf32>
    %40 = vector.shape_cast %39 : vector<1024xf32> to vector<1x1024xf32>
    %41 = arith.maximumf %38, %40 : vector<1x1024xf32>
    %c0_30 = arith.constant 0 : index
    %c0_31 = arith.constant 0 : index
    %c0_32 = arith.constant 0 : index
    %42 = vector.load %arg12[%c0_30, %c0_31, %c0_32] : memref<1x1x1024xf32, #tpu.memory_space<vmem>>, vector<1x1x1024xf32>
    %43 = vector.shape_cast %42 : vector<1x1x1024xf32> to vector<1x1024xf32>
    %44 = vector.shape_cast %41 : vector<1x1024xf32> to vector<1x1x1024xf32>
    tpu.vector_store %arg12[%c0_30, %c0_31, %c0_32], %44 {strides = array<i32>} : memref<1x1x1024xf32, #tpu.memory_space<vmem>>, vector<1x1x1024xf32>,
    return
  }
  func.func @transform_0(%arg0: i32, %arg1: i32) -> (i32, i32, i32) {
    %c0_i32 = arith.constant 0 : i32
    %c0_i32_0 = arith.constant 0 : i32
    return %arg0, %arg1, %c0_i32 : i32, i32, i32
  }
  func.func @transform_1(%arg0: i32, %arg1: i32) -> (i32, i32) {
    %c0_i32 = arith.constant 0 : i32
    %c0_i32_0 = arith.constant 0 : i32
    %c0_i32_1 = arith.constant 0 : i32
    return %c0_i32, %c0_i32_0 : i32, i32
  }
  func.func @transform_2(%arg0: i32, %arg1: i32) -> (i32, i32) {
    %c0_i32 = arith.constant 0 : i32
    %c0_i32_0 = arith.constant 0 : i32
    %c0_i32_1 = arith.constant 0 : i32
    return %c0_i32, %c0_i32_0 : i32, i32
  }
  func.func @transform_3(%arg0: i32, %arg1: i32) -> (i32, i32) {
    %c0_i32 = arith.constant 0 : i32
    %c0_i32_0 = arith.constant 0 : i32
    %c0_i32_1 = arith.constant 0 : i32
    return %c0_i32, %c0_i32_0 : i32, i32
  }
  func.func @transform_4(%arg0: i32, %arg1: i32) -> (i32, i32) {
    %c0_i32 = arith.constant 0 : i32
    %c0_i32_0 = arith.constant 0 : i32
    %c0_i32_1 = arith.constant 0 : i32
    return %c0_i32, %c0_i32_0 : i32, i32
  }
  func.func @transform_5(%arg0: i32, %arg1: i32) -> (i32, i32) {
    %c0_i32 = arith.constant 0 : i32
    %c0_i32_0 = arith.constant 0 : i32
    %c0_i32_1 = arith.constant 0 : i32
    return %c0_i32, %c0_i32_0 : i32, i32
  }
  func.func @transform_6(%arg0: i32, %arg1: i32) -> (i32, i32) {
    %c0_i32 = arith.constant 0 : i32
    %c0_i32_0 = arith.constant 0 : i32
    %c0_i32_1 = arith.constant 0 : i32
    return %c0_i32, %c0_i32_0 : i32, i32
  }
  func.func @transform_7(%arg0: i32, %arg1: i32) -> (i32, i32) {
    %c0_i32 = arith.constant 0 : i32
    %c0_i32_0 = arith.constant 0 : i32
    %c0_i32_1 = arith.constant 0 : i32
    return %c0_i32, %c0_i32_0 : i32, i32
  }
  func.func @transform_8(%arg0: i32, %arg1: i32) -> (i32, i32) {
    %c0_i32 = arith.constant 0 : i32
    %c0_i32_0 = arith.constant 0 : i32
    %c0_i32_1 = arith.constant 0 : i32
    return %c0_i32, %c0_i32_0 : i32, i32
  }
  func.func @transform_9(%arg0: i32, %arg1: i32) -> (i32, i32) {
    %c0_i32 = arith.constant 0 : i32
    %c0_i32_0 = arith.constant 0 : i32
    %c0_i32_1 = arith.constant 0 : i32
    return %c0_i32, %c0_i32_0 : i32, i32
  }
  func.func @transform_10(%arg0: i32, %arg1: i32) -> (i32, i32, i32) {
    %c0_i32 = arith.constant 0 : i32
    %c0_i32_0 = arith.constant 0 : i32
    %c0_i32_1 = arith.constant 0 : i32
    return %arg0, %c0_i32, %c0_i32_0 : i32, i32, i32
  }
}

</mosaic_0001>

<llo_original>
// kernel: tpu_custom_call.1
$region0: #{tpu_custom_call.1}
  #allocation0 [shape = 'u32[]', space=smem, size = 0x4, offset = 0x4, fixed_abs, tag = 'smem constant byte address 0x4 - core index']
  #allocation1 [shape = 'u32[144,128]{1,0:T(1,128)}', space=vmem, size = 0x12000, scoped, tag = 'internal scratch']
  %s0 = inlined_call_operand.vmem [shape: bf16[2,512,8], index: 0, kind: input, shape index: {}]
  %s1 = inlined_call_operand.vmem [shape: bf16[8,64], index: 1, kind: input, shape index: {}]
  %s2 = inlined_call_operand.vmem [shape: f32[1,64], index: 2, kind: input, shape index: {}]
  %s3 = inlined_call_operand.vmem [shape: f32[1,64], index: 3, kind: input, shape index: {}]
  %s4 = inlined_call_operand.vmem [shape: bf16[64,128], index: 4, kind: input, shape index: {}]
  %s5 = inlined_call_operand.vmem [shape: f32[1,128], index: 5, kind: input, shape index: {}]
  %s6 = inlined_call_operand.vmem [shape: f32[1,128], index: 6, kind: input, shape index: {}]
  %s7 = inlined_call_operand.vmem [shape: bf16[128,1024], index: 7, kind: input, shape index: {}]
  %s8 = inlined_call_operand.vmem [shape: f32[1,1024], index: 8, kind: input, shape index: {}]
  %s9 = inlined_call_operand.vmem [shape: f32[1,1024], index: 9, kind: input, shape index: {}]
  %s10 = inlined_call_operand.hbm [shape: f32[2,1,1024], index: 10, kind: output, shape index: {}]
  %s11 = sld [smem:[#allocation0]]
  $region77: #{tpu_custom_call.1} parent=0
    _
  %s13 = ssub.s32 1, %s11
  %s14 = scalar_select 0, %s13, %s11
  $region1: #{tpu_custom_call.1} parent=0
    #allocation2 [shape = 'u8[8192]{0}', space=vmem, size = 0x2000, scoped, tag = 'output window, operand 0']
    #allocation3 [shape = 's32[2]{0}', space=sflag, size = 0x8, scoped, tag = 'scoped memory for tpu_custom_call.1']
    %15 = vsyncpa [#allocation3], 0
    %s16 = scalar_lea.sflag [#allocation3], 1
    %17 = vsyncpa %s16, 0
    loop: start=0, step=1, limit=10
    $region2: #{tpu_custom_call.1} parent=1 // loop_pre_header
      _
    $region3: #{tpu_custom_call.1} parent=1 // loop_header
      %s19 = sphi 0, %s23
      %p20 = scmp.ge.s32.totalorder %s19, 10
      %s26 = sphi 0, %s38
      %s27 = sphi 0, %s34
      %s28 = sphi 0, %s26
      %s29 = sphi 0, %s27
      %s30 = sphi 0, %s28
      %s31 = sphi 0, %s29
      %s43 = sphi 0, %s45
      %s46 = sphi 0, %s43
      %s47 = sphi 0, %s46
      %s63 = sphi 0, %s47
      %s67 = sphi 0, %s67
      %s69 = sphi 0, %s67
      %s70 = sphi 0, %s69
      %s84 = sphi 0, %s70
      %s88 = sphi 0, %s88
      %s90 = sphi 0, %s88
      %s91 = sphi 0, %s90
      %s105 = sphi 0, %s91
      %s109 = sphi 0, %s109
      %s111 = sphi 0, %s109
      %s112 = sphi 0, %s111
      %s126 = sphi 0, %s112
      %s130 = sphi 0, %s130
      %s132 = sphi 0, %s130
      %s133 = sphi 0, %s132
      %s147 = sphi 0, %s133
      %s151 = sphi 0, %s151
      %s153 = sphi 0, %s151
      %s154 = sphi 0, %s153
      %s168 = sphi 0, %s154
      %s172 = sphi 0, %s172
      %s174 = sphi 0, %s172
      %s175 = sphi 0, %s174
      %s189 = sphi 0, %s175
      %s193 = sphi 0, %s193
      %s195 = sphi 0, %s193
      %s196 = sphi 0, %s195
      %s210 = sphi 0, %s196
      %s214 = sphi 0, %s214
      %s216 = sphi 0, %s214
      %s217 = sphi 0, %s216
      %s231 = sphi 0, %s217
      %s235 = sphi 0, %s235
      %s237 = sphi 0, %s235
      %s238 = sphi 0, %s237
      %s252 = sphi 0, %s238
      %s258 = sphi 0, %s260
      %s261 = sphi 0, %s258
      %s262 = sphi 0, %s261
      %s278 = sphi 0, %s262
    $region4: #{tpu_custom_call.1} parent=1 // loop_header_branch
      %22 = sbr.rel (%p20) target = $region8
    $region5: #{tpu_custom_call.1} parent=1 // loop_body
      %s24 = ssub.s32 %s19, 1
      %s25 = ssub.s32 %s19, 2
      %s32 = sadd.s32 1, %s27
      %p33 = scmp.ge.s32.totalorder %s32, 4
      %s34 = scalar_select %p33, 0, %s32
      %s35 = sadd.s32 1, %s26
      %s36 = scalar_select %p33, %s35, %s26
      %p37 = scmp.ge.s32.totalorder %s36, 2
      %s38 = scalar_select %p37, 0, %s36
      %s39 = ssub.s32 %s26, %s38
      %s40 = ssub.s32 %s27, %s34
      %s41 = sor.u32 %s39, %s40
      %p42 = scmp.eq.s32.totalorder %s41, 0
      %s44 = sadd.s32 %s43, 1
      %s45 = scalar_select %p42, %s43, %s44
      %p48 = pneg %p42
      %p49 = scmp.eq.s32.totalorder %s19, 7
      %p50 = por %p48, %p49
      %p51 = scmp.ne.s32.totalorder %s43, %s46
      %p52 = scmp.eq.s32.totalorder %s19, 0
      %p53 = por %p51, %p52
      %p54 = scmp.ne.s32.totalorder %s43, %s46
      %p55 = scmp.eq.s32.totalorder %s24, 7
      %p56 = por %p54, %p55
      %p57 = scmp.ne.s32.totalorder %s46, %s47
      %p58 = scmp.eq.s32.totalorder %s24, 0
      %p59 = por %p57, %p58
      %p60 = scmp.ne.s32.totalorder %s46, %s47
      %p61 = scmp.eq.s32.totalorder %s25, 7
      %p62 = por %p60, %p61
      %p64 = scmp.ne.s32.totalorder %s47, %s63
      %p65 = scmp.eq.s32.totalorder %s25, 0
      %p66 = por %p64, %p65
      %s68 = sadd.s32 %s67, 1
      %p71 = scmp.eq.s32.totalorder %s19, 7
      %p72 = scmp.ne.s32.totalorder %s67, %s69
      %p73 = scmp.eq.s32.totalorder %s19, 0
      %p74 = por %p72, %p73
      %p75 = scmp.ne.s32.totalorder %s67, %s69
      %p76 = scmp.eq.s32.totalorder %s24, 7
      %p77 = por %p75, %p76
      %p78 = scmp.ne.s32.totalorder %s69, %s70
      %p79 = scmp.eq.s32.totalorder %s24, 0
      %p80 = por %p78, %p79
      %p81 = scmp.ne.s32.totalorder %s69, %s70
      %p82 = scmp.eq.s32.totalorder %s25, 7
      %p83 = por %p81, %p82
      %p85 = scmp.ne.s32.totalorder %s70, %s84
      %p86 = scmp.eq.s32.totalorder %s25, 0
      %p87 = por %p85, %p86
      %s89 = sadd.s32 %s88, 1
      %p92 = scmp.eq.s32.totalorder %s19, 7
      %p93 = scmp.ne.s32.totalorder %s88, %s90
      %p94 = scmp.eq.s32.totalorder %s19, 0
      %p95 = por %p93, %p94
      %p96 = scmp.ne.s32.totalorder %s88, %s90
      %p97 = scmp.eq.s32.totalorder %s24, 7
      %p98 = por %p96, %p97
      %p99 = scmp.ne.s32.totalorder %s90, %s91
      %p100 = scmp.eq.s32.totalorder %s24, 0
      %p101 = por %p99, %p100
      %p102 = scmp.ne.s32.totalorder %s90, %s91
      %p103 = scmp.eq.s32.totalorder %s25, 7
      %p104 = por %p102, %p103
      %p106 = scmp.ne.s32.totalorder %s91, %s105
      %p107 = scmp.eq.s32.totalorder %s25, 0
      %p108 = por %p106, %p107
      %s110 = sadd.s32 %s109, 1
      %p113 = scmp.eq.s32.totalorder %s19, 7
      %p114 = scmp.ne.s32.totalorder %s109, %s111
      %p115 = scmp.eq.s32.totalorder %s19, 0
      %p116 = por %p114, %p115
      %p117 = scmp.ne.s32.totalorder %s109, %s111
      %p118 = scmp.eq.s32.totalorder %s24, 7
      %p119 = por %p117, %p118
      %p120 = scmp.ne.s32.totalorder %s111, %s112
      %p121 = scmp.eq.s32.totalorder %s24, 0
      %p122 = por %p120, %p121
      %p123 = scmp.ne.s32.totalorder %s111, %s112
      %p124 = scmp.eq.s32.totalorder %s25, 7
      %p125 = por %p123, %p124
      %p127 = scmp.ne.s32.totalorder %s112, %s126
      %p128 = scmp.eq.s32.totalorder %s25, 0
      %p129 = por %p127, %p128
      %s131 = sadd.s32 %s130, 1
      %p134 = scmp.eq.s32.totalorder %s19, 7
      %p135 = scmp.ne.s32.totalorder %s130, %s132
      %p136 = scmp.eq.s32.totalorder %s19, 0
      %p137 = por %p135, %p136
      %p138 = scmp.ne.s32.totalorder %s130, %s132
      %p139 = scmp.eq.s32.totalorder %s24, 7
      %p140 = por %p138, %p139
      %p141 = scmp.ne.s32.totalorder %s132, %s133
      %p142 = scmp.eq.s32.totalorder %s24, 0
      %p143 = por %p141, %p142
      %p144 = scmp.ne.s32.totalorder %s132, %s133
      %p145 = scmp.eq.s32.totalorder %s25, 7
      %p146 = por %p144, %p145
      %p148 = scmp.ne.s32.totalorder %s133, %s147
      %p149 = scmp.eq.s32.totalorder %s25, 0
      %p150 = por %p148, %p149
      %s152 = sadd.s32 %s151, 1
      %p155 = scmp.eq.s32.totalorder %s19, 7
      %p156 = scmp.ne.s32.totalorder %s151, %s153
      %p157 = scmp.eq.s32.totalorder %s19, 0
      %p158 = por %p156, %p157
      %p159 = scmp.ne.s32.totalorder %s151, %s153
      %p160 = scmp.eq.s32.totalorder %s24, 7
      %p161 = por %p159, %p160
      %p162 = scmp.ne.s32.totalorder %s153, %s154
      %p163 = scmp.eq.s32.totalorder %s24, 0
      %p164 = por %p162, %p163
      %p165 = scmp.ne.s32.totalorder %s153, %s154
      %p166 = scmp.eq.s32.totalorder %s25, 7
      %p167 = por %p165, %p166
      %p169 = scmp.ne.s32.totalorder %s154, %s168
      %p170 = scmp.eq.s32.totalorder %s25, 0
      %p171 = por %p169, %p170
      %s173 = sadd.s32 %s172, 1
      %p176 = scmp.eq.s32.totalorder %s19, 7
      %p177 = scmp.ne.s32.totalorder %s172, %s174
      %p178 = scmp.eq.s32.totalorder %s19, 0
      %p179 = por %p177, %p178
      %p180 = scmp.ne.s32.totalorder %s172, %s174
      %p181 = scmp.eq.s32.totalorder %s24, 7
      %p182 = por %p180, %p181
      %p183 = scmp.ne.s32.totalorder %s174, %s175
      %p184 = scmp.eq.s32.totalorder %s24, 0
      %p185 = por %p183, %p184
      %p186 = scmp.ne.s32.totalorder %s174, %s175
      %p187 = scmp.eq.s32.totalorder %s25, 7
      %p188 = por %p186, %p187
      %p190 = scmp.ne.s32.totalorder %s175, %s189
      %p191 = scmp.eq.s32.totalorder %s25, 0
      %p192 = por %p190, %p191
      %s194 = sadd.s32 %s193, 1
      %p197 = scmp.eq.s32.totalorder %s19, 7
      %p198 = scmp.ne.s32.totalorder %s193, %s195
      %p199 = scmp.eq.s32.totalorder %s19, 0
      %p200 = por %p198, %p199
      %p201 = scmp.ne.s32.totalorder %s193, %s195
      %p202 = scmp.eq.s32.totalorder %s24, 7
      %p203 = por %p201, %p202
      %p204 = scmp.ne.s32.totalorder %s195, %s196
      %p205 = scmp.eq.s32.totalorder %s24, 0
      %p206 = por %p204, %p205
      %p207 = scmp.ne.s32.totalorder %s195, %s196
      %p208 = scmp.eq.s32.totalorder %s25, 7
      %p209 = por %p207, %p208
      %p211 = scmp.ne.s32.totalorder %s196, %s210
      %p212 = scmp.eq.s32.totalorder %s25, 0
      %p213 = por %p211, %p212
      %s215 = sadd.s32 %s214, 1
      %p218 = scmp.eq.s32.totalorder %s19, 7
      %p219 = scmp.ne.s32.totalorder %s214, %s216
      %p220 = scmp.eq.s32.totalorder %s19, 0
      %p221 = por %p219, %p220
      %p222 = scmp.ne.s32.totalorder %s214, %s216
      %p223 = scmp.eq.s32.totalorder %s24, 7
      %p224 = por %p222, %p223
      %p225 = scmp.ne.s32.totalorder %s216, %s217
      %p226 = scmp.eq.s32.totalorder %s24, 0
      %p227 = por %p225, %p226
      %p228 = scmp.ne.s32.totalorder %s216, %s217
      %p229 = scmp.eq.s32.totalorder %s25, 7
      %p230 = por %p228, %p229
      %p232 = scmp.ne.s32.totalorder %s217, %s231
      %p233 = scmp.eq.s32.totalorder %s25, 0
      %p234 = por %p232, %p233
      %s236 = sadd.s32 %s235, 1
      %p239 = scmp.eq.s32.totalorder %s19, 7
      %p240 = scmp.ne.s32.totalorder %s235, %s237
      %p241 = scmp.eq.s32.totalorder %s19, 0
      %p242 = por %p240, %p241
      %p243 = scmp.ne.s32.totalorder %s235, %s237
      %p244 = scmp.eq.s32.totalorder %s24, 7
      %p245 = por %p243, %p244
      %p246 = scmp.ne.s32.totalorder %s237, %s238
      %p247 = scmp.eq.s32.totalorder %s24, 0
      %p248 = por %p246, %p247
      %p249 = scmp.ne.s32.totalorder %s237, %s238
      %p250 = scmp.eq.s32.totalorder %s25, 7
      %p251 = por %p249, %p250
      %p253 = scmp.ne.s32.totalorder %s238, %s252
      %p254 = scmp.eq.s32.totalorder %s25, 0
      %p255 = por %p253, %p254
      %s256 = ssub.s32 %s26, %s38
      %p257 = scmp.eq.s32.totalorder %s256, 0
      %s259 = sadd.s32 %s258, 1
      %s260 = scalar_select %p257, %s258, %s259
      %p263 = pneg %p257
      %p264 = scmp.eq.s32.totalorder %s19, 7
      %p265 = por %p263, %p264
      %p266 = scmp.ne.s32.totalorder %s258, %s261
      %p267 = scmp.eq.s32.totalorder %s19, 0
      %p268 = por %p266, %p267
      %p269 = scmp.ne.s32.totalorder %s258, %s261
      %p270 = scmp.eq.s32.totalorder %s24, 7
      %p271 = por %p269, %p270
      %p272 = scmp.ne.s32.totalorder %s261, %s262
      %p273 = scmp.eq.s32.totalorder %s24, 0
      %p274 = por %p272, %p273
      %p275 = scmp.ne.s32.totalorder %s261, %s262
      %p276 = scmp.eq.s32.totalorder %s25, 7
      %p277 = por %p275, %p276
      %p279 = scmp.ne.s32.totalorder %s262, %s278
      %p280 = scmp.eq.s32.totalorder %s25, 0
      %p281 = por %p279, %p280
      %p282 = scmp.le.s32.totalorder 1, %s19
      %p283 = scmp.lt.s32.totalorder %s19, 9
      %p284 = pnand %p282, %p283
      %p285 = pneg %p284
      // Predicated region
      $region9: #{tpu_custom_call.1} parent=5 // pred_check
        _
      $region10: #{tpu_custom_call.1} parent=5 // pred_check_branch
        %287 = sbr.rel (%p284) target = $region12
      $region11: #{tpu_custom_call.1} parent=5 // pred_region
        %s288 = ssub.s32 %s19, 1
        // Predicated region
        $region13: #{tpu_custom_call.1} parent=11 // pred_check
          %p289 = pneg %p80
        $region14: #{tpu_custom_call.1} parent=11 // pred_check_branch
          %291 = sbr.rel (%p289) target = $region16
        $region15: #{tpu_custom_call.1} parent=11 // pred_region
          _
        $region16: #{tpu_custom_call.1} parent=11 // pred_fallthru
          _
        // Predicated region
        $region17: #{tpu_custom_call.1} parent=11 // pred_check
          %p292 = pneg %p101
        $region18: #{tpu_custom_call.1} parent=11 // pred_check_branch
          %294 = sbr.rel (%p292) target = $region20
        $region19: #{tpu_custom_call.1} parent=11 // pred_region
          _
        $region20: #{tpu_custom_call.1} parent=11 // pred_fallthru
          _
        // Predicated region
        $region21: #{tpu_custom_call.1} parent=11 // pred_check
          %p295 = pneg %p122
        $region22: #{tpu_custom_call.1} parent=11 // pred_check_branch
          %297 = sbr.rel (%p295) target = $region24
        $region23: #{tpu_custom_call.1} parent=11 // pred_region
          _
        $region24: #{tpu_custom_call.1} parent=11 // pred_fallthru
          _
        // Predicated region
        $region25: #{tpu_custom_call.1} parent=11 // pred_check
          %p298 = pneg %p143
        $region26: #{tpu_custom_call.1} parent=11 // pred_check_branch
          %300 = sbr.rel (%p298) target = $region28
        $region27: #{tpu_custom_call.1} parent=11 // pred_region
          _
        $region28: #{tpu_custom_call.1} parent=11 // pred_fallthru
          _
        // Predicated region
        $region29: #{tpu_custom_call.1} parent=11 // pred_check
          %p301 = pneg %p164
        $region30: #{tpu_custom_call.1} parent=11 // pred_check_branch
          %303 = sbr.rel (%p301) target = $region32
        $region31: #{tpu_custom_call.1} parent=11 // pred_region
          _
        $region32: #{tpu_custom_call.1} parent=11 // pred_fallthru
          _
        // Predicated region
        $region33: #{tpu_custom_call.1} parent=11 // pred_check
          %p304 = pneg %p185
        $region34: #{tpu_custom_call.1} parent=11 // pred_check_branch
          %306 = sbr.rel (%p304) target = $region36
        $region35: #{tpu_custom_call.1} parent=11 // pred_region
          _
        $region36: #{tpu_custom_call.1} parent=11 // pred_fallthru
          _
        // Predicated region
        $region37: #{tpu_custom_call.1} parent=11 // pred_check
          %p307 = pneg %p206
        $region38: #{tpu_custom_call.1} parent=11 // pred_check_branch
          %309 = sbr.rel (%p307) target = $region40
        $region39: #{tpu_custom_call.1} parent=11 // pred_region
          _
        $region40: #{tpu_custom_call.1} parent=11 // pred_fallthru
          _
        // Predicated region
        $region41: #{tpu_custom_call.1} parent=11 // pred_check
          %p310 = pneg %p227
        $region42: #{tpu_custom_call.1} parent=11 // pred_check_branch
          %312 = sbr.rel (%p310) target = $region44
        $region43: #{tpu_custom_call.1} parent=11 // pred_region
          _
        $region44: #{tpu_custom_call.1} parent=11 // pred_fallthru
          _
        // Predicated region
        $region45: #{tpu_custom_call.1} parent=11 // pred_check
          %p313 = pneg %p248
        $region46: #{tpu_custom_call.1} parent=11 // pred_check_branch
          %315 = sbr.rel (%p313) target = $region48
        $region47: #{tpu_custom_call.1} parent=11 // pred_region
          _
        $region48: #{tpu_custom_call.1} parent=11 // pred_fallthru
          _
      $region12: #{tpu_custom_call.1} parent=5 // pred_fallthru
        _
      %p316 = scmp.lt.s32.totalorder %s19, 8
      // Predicated region
      $region49: #{tpu_custom_call.1} parent=5 // pred_check
        %p317 = pneg %p316
      $region50: #{tpu_custom_call.1} parent=5 // pred_check_branch
        %319 = sbr.rel (%p317) target = $region52
      $region51: #{tpu_custom_call.1} parent=5 // pred_region
        // Predicated region
        $region53: #{tpu_custom_call.1} parent=51 // pred_check
          %p320 = pneg %p53
        $region54: #{tpu_custom_call.1} parent=51 // pred_check_branch
          %322 = sbr.rel (%p320) target = $region56
        $region55: #{tpu_custom_call.1} parent=51 // pred_region
          %s323 = smul.u32 16, %s27
          %p324 = scmp.lt.s32.totalorder %s26, 1
          %s325 = scalar_select %p324, %s26, 1
          %p326 = scmp.lt.s32.totalorder %s323, 63
          %s327 = scalar_select %p326, %s323, 63
          %s328 = smul.addr %s325, 64
          %s329 = sadd.s32 %s327, %s328
          %s330 = smul.addr %s329, 4
          %s331 = scalar_lea.vmem %s0, %s330
          %s332 = smul.u32 16, %s27
        $region56: #{tpu_custom_call.1} parent=51 // pred_fallthru
          _
      $region52: #{tpu_custom_call.1} parent=5 // pred_fallthru
        _
      %p333 = scmp.le.s32.totalorder 1, %s19
      %p334 = scmp.lt.s32.totalorder %s19, 9
      %p335 = pnand %p333, %p334
      %p336 = pneg %p335
      // Predicated region
      $region57: #{tpu_custom_call.1} parent=5 // pred_check
        _
      $region58: #{tpu_custom_call.1} parent=5 // pred_check_branch
        %338 = sbr.rel (%p335) target = $region60
      $region59: #{tpu_custom_call.1} parent=5 // pred_region
        %s339 = ssub.s32 %s19, 1
        %s340 = smul.u32 16, %s29
        %p341 = scmp.lt.s32.totalorder %s28, 1
        %s342 = scalar_select %p341, %s28, 1
        %p343 = scmp.lt.s32.totalorder %s340, 63
        %s344 = scalar_select %p343, %s340, 63
        %s345 = smul.addr %s342, 64
        %s346 = sadd.s32 %s344, %s345
        %s347 = smul.addr %s346, 4
        %s348 = scalar_lea.vmem %s0, %s347
        %p349 = pneg %p59
        %p350 = pneg %p56
        %p351 = pneg %p80
        %p352 = pneg %p77
        %p353 = pneg %p101
        %p354 = pneg %p98
        %p355 = pneg %p122
        %p356 = pneg %p119
        %p357 = pneg %p143
        %p358 = pneg %p140
        %p359 = pneg %p164
        %p360 = pneg %p161
        %p361 = pneg %p185
        %p362 = pneg %p182
        %p363 = pneg %p206
        %p364 = pneg %p203
        %p365 = pneg %p227
        %p366 = pneg %p224
        %p367 = pneg %p248
        %p368 = pneg %p245
        %p369 = pneg %p274
        %p370 = pneg %p271
        %s371 = sand.u32 %s261, 1
        %s372 = scalar_lea.sflag [#allocation3], %s371
        %s373 = sand.u32 %s261, 1
        %s374 = smul.addr %s373, 8
        %s375 = scalar_lea.vmem [#allocation2], %s374
        %s376 = smul.u32 16, %s29
        %p377 = scmp.lt.s32.totalorder %s28, 1
        %s378 = scalar_select %p377, %s28, 1
        %p379 = scmp.lt.s32.totalorder %s376, 63
        %s380 = scalar_select %p379, %s376, 63
        %s381 = smul.addr %s378, 64
        %s382 = sadd.s32 %s380, %s381
        %s383 = smul.addr %s382, 4
        %s384 = scalar_lea.vmem %s0, %s383
        %s385 = smul.u32 16, %s29
        %p387 = scmp.eq.s32.totalorder %s29, 0
        // Predicated region
        $region61: #{tpu_custom_call.1} parent=59 // pred_check
          %p388 = pneg %p387
        $region62: #{tpu_custom_call.1} parent=59 // pred_check_branch
          %390 = sbr.rel (%p388) target = $region64
        $region63: #{tpu_custom_call.1} parent=59 // pred_region
          %391 = vst [vmem:[%s375] sm:$0xff] 0.0
        $region64: #{tpu_custom_call.1} parent=59 // pred_fallthru
          _
        %v392 = vld [vmem:[%s384] sm:$0xf]
        %v393 = vld [vmem:[%s384 + $0x4] sm:$0xf]
        %v394 = vld [vmem:[%s384 + $0x8] sm:$0xf]
        %v395 = vld [vmem:[%s384 + $0xc] sm:$0xf]
        %v396 = vld [vmem:[%s384 + $0x10] sm:$0xf]
        %v397 = vld [vmem:[%s384 + $0x14] sm:$0xf]
        %v398 = vld [vmem:[%s384 + $0x18] sm:$0xf]
        %v399 = vld [vmem:[%s384 + $0x1c] sm:$0xf]
        %v400 = vld [vmem:[%s384 + $0x20] sm:$0xf]
        %v401 = vld [vmem:[%s384 + $0x24] sm:$0xf]
        %v402 = vld [vmem:[%s384 + $0x28] sm:$0xf]
        %v403 = vld [vmem:[%s384 + $0x2c] sm:$0xf]
        %v404 = vld [vmem:[%s384 + $0x30] sm:$0xf]
        %v405 = vld [vmem:[%s384 + $0x34] sm:$0xf]
        %v406 = vld [vmem:[%s384 + $0x38] sm:$0xf]
        %v407 = vld [vmem:[%s384 + $0x3c] sm:$0xf]
        %v408 = vld [vmem:[%s1] sm:$0xf]
        %v425 = vunpack.c.l.b16 %v392
        %v426 = vunpack.c.l.b16 %v393
        %v427 = vunpack.c.l.b16 %v394
        %v428 = vunpack.c.l.b16 %v395
        %v429 = vunpack.c.l.b16 %v396
        %v430 = vunpack.c.l.b16 %v397
        %v431 = vunpack.c.l.b16 %v398
        %v432 = vunpack.c.l.b16 %v399
        %v433 = vunpack.c.l.b16 %v400
        %v434 = vunpack.c.l.b16 %v401
        %v435 = vunpack.c.l.b16 %v402
        %v436 = vunpack.c.l.b16 %v403
        %v437 = vunpack.c.l.b16 %v404
        %v438 = vunpack.c.l.b16 %v405
        %v439 = vunpack.c.l.b16 %v406
        %v440 = vunpack.c.l.b16 %v407
        %v441 = vpack.c.b16 %v426, %v425
        %v442 = vpack.c.b16 %v428, %v427
        %v443 = vpack.c.b16 %v430, %v429
        %v444 = vpack.c.b16 %v432, %v431
        %v445 = vpack.c.b16 %v434, %v433
        %v446 = vpack.c.b16 %v436, %v435
        %v447 = vpack.c.b16 %v438, %v437
        %v448 = vpack.c.b16 %v440, %v439
        %vm449 = vcmask 64512
        %v451 = vsel %vm449, %v441, 0
        %v454 = vsel %vm449, %v442, 0
        %v457 = vsel %vm449, %v443, 0
        %v460 = vsel %vm449, %v444, 0
        %v463 = vsel %vm449, %v445, 0
        %v466 = vsel %vm449, %v446, 0
        %v469 = vsel %vm449, %v447, 0
        %v472 = vsel %vm449, %v448, 0
        %vm474 = vcmask 1043456
        %v476 = vsel %vm474, %v408, 0
        %478 = vmatprep.subr.bf16.mxu0 0
        %479 = vmatpush1.bf16.msra.mxu0 %v476
        %480 = vmatprep.subr.bf16.mxu0 0
        %481 = vmatpush1.bf16.msra.mxu0 0
        %482 = vmatprep.subr.bf16.mxu0 0
        %483 = vmatpush1.bf16.msra.mxu0 0
        %484 = vmatprep.subr.bf16.mxu0 0
        %485 = vmatpush1.bf16.msra.mxu0 0
        %486 = vmatprep.subr.bf16.mxu0 0
        %487 = vmatpush1.bf16.msra.mxu0 0
        %488 = vmatprep.subr.bf16.mxu0 0
        %489 = vmatpush1.bf16.msra.mxu0 0
        %490 = vmatprep.subr.bf16.mxu0 0
        %491 = vmatpush1.bf16.msra.mxu0 0
        %492 = vmatprep.subr.bf16.mxu0 0
        %493 = vmatpush1.bf16.msra.mxu0 0
        %494 = vmatprep.subr.bf16.mxu0 0
        %495 = vmatpush1.bf16.msra.mxu0 0
        %496 = vmatprep.subr.bf16.mxu0 0
        %497 = vmatpush1.bf16.msra.mxu0 0
        %498 = vmatprep.subr.bf16.mxu0 0
        %499 = vmatpush1.bf16.msra.mxu0 0
        %500 = vmatprep.subr.bf16.mxu0 0
        %501 = vmatpush1.bf16.msra.mxu0 0
        %502 = vmatprep.subr.bf16.mxu0 0
        %503 = vmatpush1.bf16.msra.mxu0 0
        %504 = vmatprep.subr.bf16.mxu0 0
        %505 = vmatpush1.bf16.msra.mxu0 0
        %506 = vmatprep.subr.bf16.mxu0 0
        %507 = vmatpush1.bf16.msra.mxu0 0
        %508 = vmatprep.subr.bf16.mxu0 0
        %509 = vmatpush1.bf16.msra.mxu0 0
        %510 = vmatprep.mubr.bf16.mxu0 0
        %511 = vmatmul.mubr.bf16.gmra.mrb[0].mxu0 %v451
        %v512 = vpop.f32.mrb[0].mxu0
        %v513 = vadd.f32 0.0, %v512
        %v514 = vpop.f32.mrb[0].mxu0
        %v515 = vpop.f32.mrb[0].mxu0
        %v516 = vadd.f32 0.0, %v515
        %v517 = vpop.f32.mrb[0].mxu0
        %518 = vmatprep.mubr.bf16.mxu0 0
        %519 = vmatmul.mubr.bf16.gmra.mrb[0].mxu0 %v454
        %v520 = vpop.f32.mrb[0].mxu0
        %v521 = vadd.f32 0.0, %v520
        %v522 = vpop.f32.mrb[0].mxu0
        %v523 = vpop.f32.mrb[0].mxu0
        %v524 = vadd.f32 0.0, %v523
        %v525 = vpop.f32.mrb[0].mxu0
        %526 = vmatprep.mubr.bf16.mxu0 0
        %527 = vmatmul.mubr.bf16.gmra.mrb[0].mxu0 %v457
        %v528 = vpop.f32.mrb[0].mxu0
        %v529 = vadd.f32 0.0, %v528
        %v530 = vpop.f32.mrb[0].mxu0
        %v531 = vpop.f32.mrb[0].mxu0
        %v532 = vadd.f32 0.0, %v531
        %v533 = vpop.f32.mrb[0].mxu0
        %534 = vmatprep.mubr.bf16.mxu0 0
        %535 = vmatmul.mubr.bf16.gmra.mrb[0].mxu0 %v460
        %v536 = vpop.f32.mrb[0].mxu0
        %v537 = vadd.f32 0.0, %v536
        %v538 = vpop.f32.mrb[0].mxu0
        %v539 = vpop.f32.mrb[0].mxu0
        %v540 = vadd.f32 0.0, %v539
        %v541 = vpop.f32.mrb[0].mxu0
        %542 = vmatprep.mubr.bf16.mxu0 0
        %543 = vmatmul.mubr.bf16.gmra.mrb[0].mxu0 %v463
        %v544 = vpop.f32.mrb[0].mxu0
        %v545 = vadd.f32 0.0, %v544
        %v546 = vpop.f32.mrb[0].mxu0
        %v547 = vpop.f32.mrb[0].mxu0
        %v548 = vadd.f32 0.0, %v547
        %v549 = vpop.f32.mrb[0].mxu0
        %550 = vmatprep.mubr.bf16.mxu0 0
        %551 = vmatmul.mubr.bf16.gmra.mrb[0].mxu0 %v466
        %v552 = vpop.f32.mrb[0].mxu0
        %v553 = vadd.f32 0.0, %v552
        %v554 = vpop.f32.mrb[0].mxu0
        %v555 = vpop.f32.mrb[0].mxu0
        %v556 = vadd.f32 0.0, %v555
        %v557 = vpop.f32.mrb[0].mxu0
        %558 = vmatprep.mubr.bf16.mxu0 0
        %559 = vmatmul.mubr.bf16.gmra.mrb[0].mxu0 %v469
        %v560 = vpop.f32.mrb[0].mxu0
        %v561 = vadd.f32 0.0, %v560
        %v562 = vpop.f32.mrb[0].mxu0
        %v563 = vpop.f32.mrb[0].mxu0
        %v564 = vadd.f32 0.0, %v563
        %v565 = vpop.f32.mrb[0].mxu0
        %566 = vmatprep.mubr.bf16.mxu0 0
        %567 = vmatmul.mubr.bf16.gmra.mrb[0].mxu0 %v472
        %v568 = vpop.f32.mrb[0].mxu0
        %v569 = vadd.f32 0.0, %v568
        %v570 = vpop.f32.mrb[0].mxu0
        %v571 = vpop.f32.mrb[0].mxu0
        %v572 = vadd.f32 0.0, %v571
        %v573 = vpop.f32.mrb[0].mxu0
        %574 = vdwg.mxu0
        %v575 = vld [vmem:[%s2] sm:$0x1]
        %v577 = vlaneseq
        %v578 = vshrl.u32 %v577, 7
        %v579 = vsub.s32 0, %v578
        %v580 = vrot.slane %v575, %v579
        %v582 = vmul.f32 %v513, %v580
        %v583 = vmul.f32 %v516, %v580
        %v584 = vmul.f32 %v521, %v580
        %v585 = vmul.f32 %v524, %v580
        %v586 = vmul.f32 %v529, %v580
        %v587 = vmul.f32 %v532, %v580
        %v588 = vmul.f32 %v537, %v580
        %v589 = vmul.f32 %v540, %v580
        %v590 = vmul.f32 %v545, %v580
        %v591 = vmul.f32 %v548, %v580
        %v592 = vmul.f32 %v553, %v580
        %v593 = vmul.f32 %v556, %v580
        %v594 = vmul.f32 %v561, %v580
        %v595 = vmul.f32 %v564, %v580
        %v596 = vmul.f32 %v569, %v580
        %v597 = vmul.f32 %v572, %v580
        %v598 = vld [vmem:[%s3] sm:$0x1]
        %v600 = vlaneseq
        %v601 = vshrl.u32 %v600, 7
        %v602 = vsub.s32 0, %v601
        %v603 = vrot.slane %v598, %v602
        %v605 = vadd.f32 %v582, %v603
        %v606 = vadd.f32 %v583, %v603
        %v607 = vadd.f32 %v584, %v603
        %v608 = vadd.f32 %v585, %v603
        %v609 = vadd.f32 %v586, %v603
        %v610 = vadd.f32 %v587, %v603
        %v611 = vadd.f32 %v588, %v603
        %v612 = vadd.f32 %v589, %v603
        %v613 = vadd.f32 %v590, %v603
        %v614 = vadd.f32 %v591, %v603
        %v615 = vadd.f32 %v592, %v603
        %v616 = vadd.f32 %v593, %v603
        %v617 = vadd.f32 %v594, %v603
        %v618 = vadd.f32 %v595, %v603
        %v619 = vadd.f32 %v596, %v603
        %v620 = vadd.f32 %v597, %v603
        %v621 = vmax.f32 %v605, 0.0
        %v622 = vmax.f32 %v606, 0.0
        %v623 = vmax.f32 %v607, 0.0
        %v624 = vmax.f32 %v608, 0.0
        %v625 = vmax.f32 %v609, 0.0
        %v626 = vmax.f32 %v610, 0.0
        %v627 = vmax.f32 %v611, 0.0
        %v628 = vmax.f32 %v612, 0.0
        %v629 = vmax.f32 %v613, 0.0
        %v630 = vmax.f32 %v614, 0.0
        %v631 = vmax.f32 %v615, 0.0
        %v632 = vmax.f32 %v616, 0.0
        %v633 = vmax.f32 %v617, 0.0
        %v634 = vmax.f32 %v618, 0.0
        %v635 = vmax.f32 %v619, 0.0
        %v636 = vmax.f32 %v620, 0.0
        %v637 = vpack.c.bf16 %v622, %v621
        %v638 = vpack.c.bf16 %v624, %v623
        %v639 = vpack.c.bf16 %v626, %v625
        %v640 = vpack.c.bf16 %v628, %v627
        %v641 = vpack.c.bf16 %v630, %v629
        %v642 = vpack.c.bf16 %v632, %v631
        %v643 = vpack.c.bf16 %v634, %v633
        %v644 = vpack.c.bf16 %v636, %v635
        %v645 = vld [vmem:[%s4] sm:$0xf]
        %v646 = vld [vmem:[%s4 + $0x4] sm:$0xf]
        %v647 = vld [vmem:[%s4 + $0x8] sm:$0xf]
        %v648 = vld [vmem:[%s4 + $0xc] sm:$0xf]
        %v649 = vld [vmem:[%s4 + $0x10] sm:$0xf]
        %v650 = vld [vmem:[%s4 + $0x14] sm:$0xf]
        %v651 = vld [vmem:[%s4 + $0x18] sm:$0xf]
        %v652 = vld [vmem:[%s4 + $0x1c] sm:$0xf]
        %v661 = vunpack.c.l.b16 %v645
        %v662 = vunpack.c.l.b16 %v646
        %v663 = vunpack.c.l.b16 %v647
        %v664 = vunpack.c.l.b16 %v648
        %v665 = vunpack.c.l.b16 %v649
        %v666 = vunpack.c.l.b16 %v650
        %v667 = vunpack.c.l.b16 %v651
        %v668 = vunpack.c.l.b16 %v652
        %v669 = vpack.c.b16 %v662, %v661
        %v670 = vpack.c.b16 %v664, %v663
        %v671 = vpack.c.b16 %v666, %v665
        %v672 = vpack.c.b16 %v668, %v667
        %vm677 = vcmask 523264
        %v679 = vsel %vm677, %v637, 0
        %v682 = vsel %vm677, %v638, 0
        %v685 = vsel %vm677, %v639, 0
        %v688 = vsel %vm677, %v640, 0
        %v691 = vsel %vm677, %v641, 0
        %v694 = vsel %vm677, %v642, 0
        %v697 = vsel %vm677, %v643, 0
        %v700 = vsel %vm677, %v644, 0
        %702 = vmatprep.subr.bf16.mxu0 0
        %703 = vmatpush1.bf16.msra.mxu0 %v669
        %704 = vmatprep.subr.bf16.mxu0 0
        %705 = vmatpush1.bf16.msra.mxu0 %v670
        %706 = vmatprep.subr.bf16.mxu0 0
        %707 = vmatpush1.bf16.msra.mxu0 %v671
        %708 = vmatprep.subr.bf16.mxu0 0
        %709 = vmatpush1.bf16.msra.mxu0 %v672
        %710 = vmatprep.subr.bf16.mxu0 0
        %711 = vmatpush1.bf16.msra.mxu0 0
        %712 = vmatprep.subr.bf16.mxu0 0
        %713 = vmatpush1.bf16.msra.mxu0 0
        %714 = vmatprep.subr.bf16.mxu0 0
        %715 = vmatpush1.bf16.msra.mxu0 0
        %716 = vmatprep.subr.bf16.mxu0 0
        %717 = vmatpush1.bf16.msra.mxu0 0
        %718 = vmatprep.subr.bf16.mxu0 0
        %719 = vmatpush1.bf16.msra.mxu0 0
        %720 = vmatprep.subr.bf16.mxu0 0
        %721 = vmatpush1.bf16.msra.mxu0 0
        %722 = vmatprep.subr.bf16.mxu0 0
        %723 = vmatpush1.bf16.msra.mxu0 0
        %724 = vmatprep.subr.bf16.mxu0 0
        %725 = vmatpush1.bf16.msra.mxu0 0
        %726 = vmatprep.subr.bf16.mxu0 0
        %727 = vmatpush1.bf16.msra.mxu0 0
        %728 = vmatprep.subr.bf16.mxu0 0
        %729 = vmatpush1.bf16.msra.mxu0 0
        %730 = vmatprep.subr.bf16.mxu0 0
        %731 = vmatpush1.bf16.msra.mxu0 0
        %732 = vmatprep.subr.bf16.mxu0 0
        %733 = vmatpush1.bf16.msra.mxu0 0
        %734 = vmatprep.mubr.bf16.mxu0 0
        %735 = vmatmul.mubr.bf16.gmra.mrb[0].mxu0 %v679
        %v736 = vpop.f32.mrb[0].mxu0
        %v737 = vadd.f32 0.0, %v736
        %v738 = vpop.f32.mrb[0].mxu0
        %v739 = vpop.f32.mrb[0].mxu0
        %v740 = vadd.f32 0.0, %v739
        %v741 = vpop.f32.mrb[0].mxu0
        %742 = vmatprep.mubr.bf16.mxu0 0
        %743 = vmatmul.mubr.bf16.gmra.mrb[0].mxu0 %v682
        %v744 = vpop.f32.mrb[0].mxu0
        %v745 = vadd.f32 0.0, %v744
        %v746 = vpop.f32.mrb[0].mxu0
        %v747 = vpop.f32.mrb[0].mxu0
        %v748 = vadd.f32 0.0, %v747
        %v749 = vpop.f32.mrb[0].mxu0
        %750 = vmatprep.mubr.bf16.mxu0 0
        %751 = vmatmul.mubr.bf16.gmra.mrb[0].mxu0 %v685
        %v752 = vpop.f32.mrb[0].mxu0
        %v753 = vadd.f32 0.0, %v752
        %v754 = vpop.f32.mrb[0].mxu0
        %v755 = vpop.f32.mrb[0].mxu0
        %v756 = vadd.f32 0.0, %v755
        %v757 = vpop.f32.mrb[0].mxu0
        %758 = vmatprep.mubr.bf16.mxu0 0
        %759 = vmatmul.mubr.bf16.gmra.mrb[0].mxu0 %v688
        %v760 = vpop.f32.mrb[0].mxu0
        %v761 = vadd.f32 0.0, %v760
        %v762 = vpop.f32.mrb[0].mxu0
        %v763 = vpop.f32.mrb[0].mxu0
        %v764 = vadd.f32 0.0, %v763
        %v765 = vpop.f32.mrb[0].mxu0
        %766 = vmatprep.mubr.bf16.mxu0 0
        %767 = vmatmul.mubr.bf16.gmra.mrb[0].mxu0 %v691
        %v768 = vpop.f32.mrb[0].mxu0
        %v769 = vadd.f32 0.0, %v768
        %v770 = vpop.f32.mrb[0].mxu0
        %v771 = vpop.f32.mrb[0].mxu0
        %v772 = vadd.f32 0.0, %v771
        %v773 = vpop.f32.mrb[0].mxu0
        %774 = vmatprep.mubr.bf16.mxu0 0
        %775 = vmatmul.mubr.bf16.gmra.mrb[0].mxu0 %v694
        %v776 = vpop.f32.mrb[0].mxu0
        %v777 = vadd.f32 0.0, %v776
        %v778 = vpop.f32.mrb[0].mxu0
        %v779 = vpop.f32.mrb[0].mxu0
        %v780 = vadd.f32 0.0, %v779
        %v781 = vpop.f32.mrb[0].mxu0
        %782 = vmatprep.mubr.bf16.mxu0 0
        %783 = vmatmul.mubr.bf16.gmra.mrb[0].mxu0 %v697
        %v784 = vpop.f32.mrb[0].mxu0
        %v785 = vadd.f32 0.0, %v784
        %v786 = vpop.f32.mrb[0].mxu0
        %v787 = vpop.f32.mrb[0].mxu0
        %v788 = vadd.f32 0.0, %v787
        %v789 = vpop.f32.mrb[0].mxu0
        %790 = vmatprep.mubr.bf16.mxu0 0
        %791 = vmatmul.mubr.bf16.gmra.mrb[0].mxu0 %v700
        %v792 = vpop.f32.mrb[0].mxu0
        %v793 = vadd.f32 0.0, %v792
        %v794 = vpop.f32.mrb[0].mxu0
        %v795 = vpop.f32.mrb[0].mxu0
        %v796 = vadd.f32 0.0, %v795
        %v797 = vpop.f32.mrb[0].mxu0
        %798 = vdwg.mxu0
        %v799 = vld [vmem:[%s5] sm:$0x1]
        %v801 = vlaneseq
        %v802 = vshrl.u32 %v801, 7
        %v803 = vsub.s32 0, %v802
        %v804 = vrot.slane %v799, %v803
        %v806 = vmul.f32 %v737, %v804
        %v807 = vmul.f32 %v740, %v804
        %v808 = vmul.f32 %v745, %v804
        %v809 = vmul.f32 %v748, %v804
        %v810 = vmul.f32 %v753, %v804
        %v811 = vmul.f32 %v756, %v804
        %v812 = vmul.f32 %v761, %v804
        %v813 = vmul.f32 %v764, %v804
        %v814 = vmul.f32 %v769, %v804
        %v815 = vmul.f32 %v772, %v804
        %v816 = vmul.f32 %v777, %v804
        %v817 = vmul.f32 %v780, %v804
        %v818 = vmul.f32 %v785, %v804
        %v819 = vmul.f32 %v788, %v804
        %v820 = vmul.f32 %v793, %v804
        %v821 = vmul.f32 %v796, %v804
        %v822 = vld [vmem:[%s6] sm:$0x1]
        %v824 = vlaneseq
        %v825 = vshrl.u32 %v824, 7
        %v826 = vsub.s32 0, %v825
        %v827 = vrot.slane %v822, %v826
        %v829 = vadd.f32 %v806, %v827
        %v830 = vadd.f32 %v807, %v827
        %v831 = vadd.f32 %v808, %v827
        %v832 = vadd.f32 %v809, %v827
        %v833 = vadd.f32 %v810, %v827
        %v834 = vadd.f32 %v811, %v827
        %v835 = vadd.f32 %v812, %v827
        %v836 = vadd.f32 %v813, %v827
        %v837 = vadd.f32 %v814, %v827
        %v838 = vadd.f32 %v815, %v827
        %v839 = vadd.f32 %v816, %v827
        %v840 = vadd.f32 %v817, %v827
        %v841 = vadd.f32 %v818, %v827
        %v842 = vadd.f32 %v819, %v827
        %v843 = vadd.f32 %v820, %v827
        %v844 = vadd.f32 %v821, %v827
        %v845 = vmax.f32 %v829, 0.0
        %v846 = vmax.f32 %v830, 0.0
        %v847 = vmax.f32 %v831, 0.0
        %v848 = vmax.f32 %v832, 0.0
        %v849 = vmax.f32 %v833, 0.0
        %v850 = vmax.f32 %v834, 0.0
        %v851 = vmax.f32 %v835, 0.0
        %v852 = vmax.f32 %v836, 0.0
        %v853 = vmax.f32 %v837, 0.0
        %v854 = vmax.f32 %v838, 0.0
        %v855 = vmax.f32 %v839, 0.0
        %v856 = vmax.f32 %v840, 0.0
        %v857 = vmax.f32 %v841, 0.0
        %v858 = vmax.f32 %v842, 0.0
        %v859 = vmax.f32 %v843, 0.0
        %v860 = vmax.f32 %v844, 0.0
        %v861 = vpack.c.bf16 %v846, %v845
        %v862 = vpack.c.bf16 %v848, %v847
        %v863 = vpack.c.bf16 %v850, %v849
        %v864 = vpack.c.bf16 %v852, %v851
        %v865 = vpack.c.bf16 %v854, %v853
        %v866 = vpack.c.bf16 %v856, %v855
        %v867 = vpack.c.bf16 %v858, %v857
        %v868 = vpack.c.bf16 %v860, %v859
        %v869 = vld [vmem:[%s7] sm:$0xff]
        %v870 = vld [vmem:[%s7 + $0x8] sm:$0xff]
        %v871 = vld [vmem:[%s7 + $0x10] sm:$0xff]
        %v872 = vld [vmem:[%s7 + $0x18] sm:$0xff]
        %v873 = vld [vmem:[%s7 + $0x20] sm:$0xff]
        %v874 = vld [vmem:[%s7 + $0x28] sm:$0xff]
        %v875 = vld [vmem:[%s7 + $0x30] sm:$0xff]
        %v876 = vld [vmem:[%s7 + $0x38] sm:$0xff]
        %v877 = vld [vmem:[%s7 + $0x40] sm:$0xff]
        %v878 = vld [vmem:[%s7 + $0x48] sm:$0xff]
        %v879 = vld [vmem:[%s7 + $0x50] sm:$0xff]
        %v880 = vld [vmem:[%s7 + $0x58] sm:$0xff]
        %v881 = vld [vmem:[%s7 + $0x60] sm:$0xff]
        %v882 = vld [vmem:[%s7 + $0x68] sm:$0xff]
        %v883 = vld [vmem:[%s7 + $0x70] sm:$0xff]
        %v884 = vld [vmem:[%s7 + $0x78] sm:$0xff]
        %v885 = vld [vmem:[%s7 + $0x80] sm:$0xff]
        %v886 = vld [vmem:[%s7 + $0x88] sm:$0xff]
        %v887 = vld [vmem:[%s7 + $0x90] sm:$0xff]
        %v888 = vld [vmem:[%s7 + $0x98] sm:$0xff]
        %v889 = vld [vmem:[%s7 + $0xa0] sm:$0xff]
        %v890 = vld [vmem:[%s7 + $0xa8] sm:$0xff]
        %v891 = vld [vmem:[%s7 + $0xb0] sm:$0xff]
        %v892 = vld [vmem:[%s7 + $0xb8] sm:$0xff]
        %v893 = vld [vmem:[%s7 + $0xc0] sm:$0xff]
        %v894 = vld [vmem:[%s7 + $0xc8] sm:$0xff]
        %v895 = vld [vmem:[%s7 + $0xd0] sm:$0xff]
        %v896 = vld [vmem:[%s7 + $0xd8] sm:$0xff]
        %v897 = vld [vmem:[%s7 + $0xe0] sm:$0xff]
        %v898 = vld [vmem:[%s7 + $0xe8] sm:$0xff]
        %v899 = vld [vmem:[%s7 + $0xf0] sm:$0xff]
        %v900 = vld [vmem:[%s7 + $0xf8] sm:$0xff]
        %v901 = vld [vmem:[%s7 + $0x100] sm:$0xff]
        %v902 = vld [vmem:[%s7 + $0x108] sm:$0xff]
        %v903 = vld [vmem:[%s7 + $0x110] sm:$0xff]
        %v904 = vld [vmem:[%s7 + $0x118] sm:$0xff]
        %v905 = vld [vmem:[%s7 + $0x120] sm:$0xff]
        %v906 = vld [vmem:[%s7 + $0x128] sm:$0xff]
        %v907 = vld [vmem:[%s7 + $0x130] sm:$0xff]
        %v908 = vld [vmem:[%s7 + $0x138] sm:$0xff]
        %v909 = vld [vmem:[%s7 + $0x140] sm:$0xff]
        %v910 = vld [vmem:[%s7 + $0x148] sm:$0xff]
        %v911 = vld [vmem:[%s7 + $0x150] sm:$0xff]
        %v912 = vld [vmem:[%s7 + $0x158] sm:$0xff]
        %v913 = vld [vmem:[%s7 + $0x160] sm:$0xff]
        %v914 = vld [vmem:[%s7 + $0x168] sm:$0xff]
        %v915 = vld [vmem:[%s7 + $0x170] sm:$0xff]
        %v916 = vld [vmem:[%s7 + $0x178] sm:$0xff]
        %v917 = vld [vmem:[%s7 + $0x180] sm:$0xff]
        %v918 = vld [vmem:[%s7 + $0x188] sm:$0xff]
        %v919 = vld [vmem:[%s7 + $0x190] sm:$0xff]
        %v920 = vld [vmem:[%s7 + $0x198] sm:$0xff]
        %v921 = vld [vmem:[%s7 + $0x1a0] sm:$0xff]
        %v922 = vld [vmem:[%s7 + $0x1a8] sm:$0xff]
        %v923 = vld [vmem:[%s7 + $0x1b0] sm:$0xff]
        %v924 = vld [vmem:[%s7 + $0x1b8] sm:$0xff]
        %v925 = vld [vmem:[%s7 + $0x1c0] sm:$0xff]
        %v926 = vld [vmem:[%s7 + $0x1c8] sm:$0xff]
        %v927 = vld [vmem:[%s7 + $0x1d0] sm:$0xff]
        %v928 = vld [vmem:[%s7 + $0x1d8] sm:$0xff]
        %v929 = vld [vmem:[%s7 + $0x1e0] sm:$0xff]
        %v930 = vld [vmem:[%s7 + $0x1e8] sm:$0xff]
        %v931 = vld [vmem:[%s7 + $0x1f0] sm:$0xff]
        %v932 = vld [vmem:[%s7 + $0x1f8] sm:$0xff]
        %v997 = vunpack.c.l.b16 %v869
        %v998 = vunpack.c.h.b16 %v869
        %v999 = vunpack.c.l.b16 %v870
        %v1000 = vunpack.c.h.b16 %v870
        %v1001 = vunpack.c.l.b16 %v871
        %v1002 = vunpack.c.h.b16 %v871
        %v1003 = vunpack.c.l.b16 %v872
        %v1004 = vunpack.c.h.b16 %v872
        %v1005 = vunpack.c.l.b16 %v873
        %v1006 = vunpack.c.h.b16 %v873
        %v1007 = vunpack.c.l.b16 %v874
        %v1008 = vunpack.c.h.b16 %v874
        %v1009 = vunpack.c.l.b16 %v875
        %v1010 = vunpack.c.h.b16 %v875
        %v1011 = vunpack.c.l.b16 %v876
        %v1012 = vunpack.c.h.b16 %v876
        %v1013 = vunpack.c.l.b16 %v877
        %v1014 = vunpack.c.h.b16 %v877
        %v1015 = vunpack.c.l.b16 %v878
        %v1016 = vunpack.c.h.b16 %v878
        %v1017 = vunpack.c.l.b16 %v879
        %v1018 = vunpack.c.h.b16 %v879
        %v1019 = vunpack.c.l.b16 %v880
        %v1020 = vunpack.c.h.b16 %v880
        %v1021 = vunpack.c.l.b16 %v881
        %v1022 = vunpack.c.h.b16 %v881
        %v1023 = vunpack.c.l.b16 %v882
        %v1024 = vunpack.c.h.b16 %v882
        %v1025 = vunpack.c.l.b16 %v883
        %v1026 = vunpack.c.h.b16 %v883
        %v1027 = vunpack.c.l.b16 %v884
        %v1028 = vunpack.c.h.b16 %v884
        %v1029 = vunpack.c.l.b16 %v885
        %v1030 = vunpack.c.h.b16 %v885
        %v1031 = vunpack.c.l.b16 %v886
        %v1032 = vunpack.c.h.b16 %v886
        %v1033 = vunpack.c.l.b16 %v887
        %v1034 = vunpack.c.h.b16 %v887
        %v1035 = vunpack.c.l.b16 %v888
        %v1036 = vunpack.c.h.b16 %v888
        %v1037 = vunpack.c.l.b16 %v889
        %v1038 = vunpack.c.h.b16 %v889
        %v1039 = vunpack.c.l.b16 %v890
        %v1040 = vunpack.c.h.b16 %v890
        %v1041 = vunpack.c.l.b16 %v891
        %v1042 = vunpack.c.h.b16 %v891
        %v1043 = vunpack.c.l.b16 %v892
        %v1044 = vunpack.c.h.b16 %v892
        %v1045 = vunpack.c.l.b16 %v893
        %v1046 = vunpack.c.h.b16 %v893
        %v1047 = vunpack.c.l.b16 %v894
        %v1048 = vunpack.c.h.b16 %v894
        %v1049 = vunpack.c.l.b16 %v895
        %v1050 = vunpack.c.h.b16 %v895
        %v1051 = vunpack.c.l.b16 %v896
        %v1052 = vunpack.c.h.b16 %v896
        %v1053 = vunpack.c.l.b16 %v897
        %v1054 = vunpack.c.h.b16 %v897
        %v1055 = vunpack.c.l.b16 %v898
        %v1056 = vunpack.c.h.b16 %v898
        %v1057 = vunpack.c.l.b16 %v899
        %v1058 = vunpack.c.h.b16 %v899
        %v1059 = vunpack.c.l.b16 %v900
        %v1060 = vunpack.c.h.b16 %v900
        %v1061 = vunpack.c.l.b16 %v901
        %v1062 = vunpack.c.h.b16 %v901
        %v1063 = vunpack.c.l.b16 %v902
        %v1064 = vunpack.c.h.b16 %v902
        %v1065 = vunpack.c.l.b16 %v903
        %v1066 = vunpack.c.h.b16 %v903
        %v1067 = vunpack.c.l.b16 %v904
        %v1068 = vunpack.c.h.b16 %v904
        %v1069 = vunpack.c.l.b16 %v905
        %v1070 = vunpack.c.h.b16 %v905
        %v1071 = vunpack.c.l.b16 %v906
        %v1072 = vunpack.c.h.b16 %v906
        %v1073 = vunpack.c.l.b16 %v907
        %v1074 = vunpack.c.h.b16 %v907
        %v1075 = vunpack.c.l.b16 %v908
        %v1076 = vunpack.c.h.b16 %v908
        %v1077 = vunpack.c.l.b16 %v909
        %v1078 = vunpack.c.h.b16 %v909
        %v1079 = vunpack.c.l.b16 %v910
        %v1080 = vunpack.c.h.b16 %v910
        %v1081 = vunpack.c.l.b16 %v911
        %v1082 = vunpack.c.h.b16 %v911
        %v1083 = vunpack.c.l.b16 %v912
        %v1084 = vunpack.c.h.b16 %v912
        %v1085 = vunpack.c.l.b16 %v913
        %v1086 = vunpack.c.h.b16 %v913
        %v1087 = vunpack.c.l.b16 %v914
        %v1088 = vunpack.c.h.b16 %v914
        %v1089 = vunpack.c.l.b16 %v915
        %v1090 = vunpack.c.h.b16 %v915
        %v1091 = vunpack.c.l.b16 %v916
        %v1092 = vunpack.c.h.b16 %v916
        %v1093 = vunpack.c.l.b16 %v917
        %v1094 = vunpack.c.h.b16 %v917
        %v1095 = vunpack.c.l.b16 %v918
        %v1096 = vunpack.c.h.b16 %v918
        %v1097 = vunpack.c.l.b16 %v919
        %v1098 = vunpack.c.h.b16 %v919
        %v1099 = vunpack.c.l.b16 %v920
        %v1100 = vunpack.c.h.b16 %v920
        %v1101 = vunpack.c.l.b16 %v921
        %v1102 = vunpack.c.h.b16 %v921
        %v1103 = vunpack.c.l.b16 %v922
        %v1104 = vunpack.c.h.b16 %v922
        %v1105 = vunpack.c.l.b16 %v923
        %v1106 = vunpack.c.h.b16 %v923
        %v1107 = vunpack.c.l.b16 %v924
        %v1108 = vunpack.c.h.b16 %v924
        %v1109 = vunpack.c.l.b16 %v925
        %v1110 = vunpack.c.h.b16 %v925
        %v1111 = vunpack.c.l.b16 %v926
        %v1112 = vunpack.c.h.b16 %v926
        %v1113 = vunpack.c.l.b16 %v927
        %v1114 = vunpack.c.h.b16 %v927
        %v1115 = vunpack.c.l.b16 %v928
        %v1116 = vunpack.c.h.b16 %v928
        %v1117 = vunpack.c.l.b16 %v929
        %v1118 = vunpack.c.h.b16 %v929
        %v1119 = vunpack.c.l.b16 %v930
        %v1120 = vunpack.c.h.b16 %v930
        %v1121 = vunpack.c.l.b16 %v931
        %v1122 = vunpack.c.h.b16 %v931
        %v1123 = vunpack.c.l.b16 %v932
        %v1124 = vunpack.c.h.b16 %v932
        %v1125 = vpack.c.b16 %v1005, %v997
        %v1126 = vpack.c.b16 %v1006, %v998
        %v1127 = vpack.c.b16 %v1007, %v999
        %v1128 = vpack.c.b16 %v1008, %v1000
        %v1129 = vpack.c.b16 %v1009, %v1001
        %v1130 = vpack.c.b16 %v1010, %v1002
        %v1131 = vpack.c.b16 %v1011, %v1003
        %v1132 = vpack.c.b16 %v1012, %v1004
        %v1133 = vpack.c.b16 %v1021, %v1013
        %v1134 = vpack.c.b16 %v1022, %v1014
        %v1135 = vpack.c.b16 %v1023, %v1015
        %v1136 = vpack.c.b16 %v1024, %v1016
        %v1137 = vpack.c.b16 %v1025, %v1017
        %v1138 = vpack.c.b16 %v1026, %v1018
        %v1139 = vpack.c.b16 %v1027, %v1019
        %v1140 = vpack.c.b16 %v1028, %v1020
        %v1141 = vpack.c.b16 %v1037, %v1029
        %v1142 = vpack.c.b16 %v1038, %v1030
        %v1143 = vpack.c.b16 %v1039, %v1031
        %v1144 = vpack.c.b16 %v1040, %v1032
        %v1145 = vpack.c.b16 %v1041, %v1033
        %v1146 = vpack.c.b16 %v1042, %v1034
        %v1147 = vpack.c.b16 %v1043, %v1035
        %v1148 = vpack.c.b16 %v1044, %v1036
        %v1149 = vpack.c.b16 %v1053, %v1045
        %v1150 = vpack.c.b16 %v1054, %v1046
        %v1151 = vpack.c.b16 %v1055, %v1047
        %v1152 = vpack.c.b16 %v1056, %v1048
        %v1153 = vpack.c.b16 %v1057, %v1049
        %v1154 = vpack.c.b16 %v1058, %v1050
        %v1155 = vpack.c.b16 %v1059, %v1051
        %v1156 = vpack.c.b16 %v1060, %v1052
        %v1157 = vpack.c.b16 %v1069, %v1061
        %v1158 = vpack.c.b16 %v1070, %v1062
        %v1159 = vpack.c.b16 %v1071, %v1063
        %v1160 = vpack.c.b16 %v1072, %v1064
        %v1161 = vpack.c.b16 %v1073, %v1065
        %v1162 = vpack.c.b16 %v1074, %v1066
        %v1163 = vpack.c.b16 %v1075, %v1067
        %v1164 = vpack.c.b16 %v1076, %v1068
        %v1165 = vpack.c.b16 %v1085, %v1077
        %v1166 = vpack.c.b16 %v1086, %v1078
        %v1167 = vpack.c.b16 %v1087, %v1079
        %v1168 = vpack.c.b16 %v1088, %v1080
        %v1169 = vpack.c.b16 %v1089, %v1081
        %v1170 = vpack.c.b16 %v1090, %v1082
        %v1171 = vpack.c.b16 %v1091, %v1083
        %v1172 = vpack.c.b16 %v1092, %v1084
        %v1173 = vpack.c.b16 %v1101, %v1093
        %v1174 = vpack.c.b16 %v1102, %v1094
        %v1175 = vpack.c.b16 %v1103, %v1095
        %v1176 = vpack.c.b16 %v1104, %v1096
        %v1177 = vpack.c.b16 %v1105, %v1097
        %v1178 = vpack.c.b16 %v1106, %v1098
        %v1179 = vpack.c.b16 %v1107, %v1099
        %v1180 = vpack.c.b16 %v1108, %v1100
        %v1181 = vpack.c.b16 %v1117, %v1109
        %v1182 = vpack.c.b16 %v1118, %v1110
        %v1183 = vpack.c.b16 %v1119, %v1111
        %v1184 = vpack.c.b16 %v1120, %v1112
        %v1185 = vpack.c.b16 %v1121, %v1113
        %v1186 = vpack.c.b16 %v1122, %v1114
        %v1187 = vpack.c.b16 %v1123, %v1115
        %v1188 = vpack.c.b16 %v1124, %v1116
        %1253 = vmatprep.subr.bf16.mxu0 %v1126
        %1254 = vmatpush1.bf16.msra.mxu0 %v1125
        %1255 = vmatprep.subr.bf16.mxu0 %v1134
        %1256 = vmatpush1.bf16.msra.mxu0 %v1133
        %1257 = vmatprep.subr.bf16.mxu0 %v1142
        %1258 = vmatpush1.bf16.msra.mxu0 %v1141
        %1259 = vmatprep.subr.bf16.mxu0 %v1150
        %1260 = vmatpush1.bf16.msra.mxu0 %v1149
        %1261 = vmatprep.subr.bf16.mxu0 %v1158
        %1262 = vmatpush1.bf16.msra.mxu0 %v1157
        %1263 = vmatprep.subr.bf16.mxu0 %v1166
        %1264 = vmatpush1.bf16.msra.mxu0 %v1165
        %1265 = vmatprep.subr.bf16.mxu0 %v1174
        %1266 = vmatpush1.bf16.msra.mxu0 %v1173
        %1267 = vmatprep.subr.bf16.mxu0 %v1182
        %1268 = vmatpush1.bf16.msra.mxu0 %v1181
        %1269 = vmatprep.subr.bf16.mxu0 0
        %1270 = vmatpush1.bf16.msra.mxu0 0
        %1271 = vmatprep.subr.bf16.mxu0 0
        %1272 = vmatpush1.bf16.msra.mxu0 0
        %1273 = vmatprep.subr.bf16.mxu0 0
        %1274 = vmatpush1.bf16.msra.mxu0 0
        %1275 = vmatprep.subr.bf16.mxu0 0
        %1276 = vmatpush1.bf16.msra.mxu0 0
        %1277 = vmatprep.subr.bf16.mxu0 0
        %1278 = vmatpush1.bf16.msra.mxu0 0
        %1279 = vmatprep.subr.bf16.mxu0 0
        %1280 = vmatpush1.bf16.msra.mxu0 0
        %1281 = vmatprep.subr.bf16.mxu0 0
        %1282 = vmatpush1.bf16.msra.mxu0 0
        %1283 = vmatprep.subr.bf16.mxu0 0
        %1284 = vmatpush1.bf16.msra.mxu0 0
        %1285 = vmatprep.mubr.bf16.mxu0 0
        %1286 = vmatmul.mubr.bf16.gmra.mrb[0].mxu0 %v861
        %v1287 = vpop.f32.mrb[0].mxu0
        %v1288 = vadd.f32 0.0, %v1287
        %v1289 = vpop.f32.mrb[0].mxu0
        %v1290 = vadd.f32 0.0, %v1289
        %v1291 = vpop.f32.mrb[0].mxu0
        %v1292 = vadd.f32 0.0, %v1291
        %v1293 = vpop.f32.mrb[0].mxu0
        %v1294 = vadd.f32 0.0, %v1293
        %1295 = vmatprep.mubr.bf16.mxu0 0
        %1296 = vmatmul.mubr.bf16.gmra.mrb[0].mxu0 %v862
        %v1297 = vpop.f32.mrb[0].mxu0
        %v1298 = vadd.f32 0.0, %v1297
        %v1299 = vpop.f32.mrb[0].mxu0
        %v1300 = vadd.f32 0.0, %v1299
        %v1301 = vpop.f32.mrb[0].mxu0
        %v1302 = vadd.f32 0.0, %v1301
        %v1303 = vpop.f32.mrb[0].mxu0
        %v1304 = vadd.f32 0.0, %v1303
        %1305 = vmatprep.mubr.bf16.mxu0 0
        %1306 = vmatmul.mubr.bf16.gmra.mrb[0].mxu0 %v863
        %v1307 = vpop.f32.mrb[0].mxu0
        %v1308 = vadd.f32 0.0, %v1307
        %v1309 = vpop.f32.mrb[0].mxu0
        %v1310 = vadd.f32 0.0, %v1309
        %v1311 = vpop.f32.mrb[0].mxu0
        %v1312 = vadd.f32 0.0, %v1311
        %v1313 = vpop.f32.mrb[0].mxu0
        %v1314 = vadd.f32 0.0, %v1313
        %1315 = vmatprep.mubr.bf16.mxu0 0
        %1316 = vmatmul.mubr.bf16.gmra.mrb[0].mxu0 %v864
        %v1317 = vpop.f32.mrb[0].mxu0
        %v1318 = vadd.f32 0.0, %v1317
        %v1319 = vpop.f32.mrb[0].mxu0
        %v1320 = vadd.f32 0.0, %v1319
        %v1321 = vpop.f32.mrb[0].mxu0
        %v1322 = vadd.f32 0.0, %v1321
        %v1323 = vpop.f32.mrb[0].mxu0
        %v1324 = vadd.f32 0.0, %v1323
        %1325 = vmatprep.mubr.bf16.mxu0 0
        %1326 = vmatmul.mubr.bf16.gmra.mrb[0].mxu0 %v865
        %v1327 = vpop.f32.mrb[0].mxu0
        %v1328 = vadd.f32 0.0, %v1327
        %v1329 = vpop.f32.mrb[0].mxu0
        %v1330 = vadd.f32 0.0, %v1329
        %v1331 = vpop.f32.mrb[0].mxu0
        %v1332 = vadd.f32 0.0, %v1331
        %v1333 = vpop.f32.mrb[0].mxu0
        %v1334 = vadd.f32 0.0, %v1333
        %1335 = vmatprep.mubr.bf16.mxu0 0
        %1336 = vmatmul.mubr.bf16.gmra.mrb[0].mxu0 %v866
        %v1337 = vpop.f32.mrb[0].mxu0
        %v1338 = vadd.f32 0.0, %v1337
        %v1339 = vpop.f32.mrb[0].mxu0
        %v1340 = vadd.f32 0.0, %v1339
        %v1341 = vpop.f32.mrb[0].mxu0
        %v1342 = vadd.f32 0.0, %v1341
        %v1343 = vpop.f32.mrb[0].mxu0
        %v1344 = vadd.f32 0.0, %v1343
        %1345 = vmatprep.mubr.bf16.mxu0 0
        %1346 = vmatmul.mubr.bf16.gmra.mrb[0].mxu0 %v867
        %v1347 = vpop.f32.mrb[0].mxu0
        %v1348 = vadd.f32 0.0, %v1347
        %v1349 = vpop.f32.mrb[0].mxu0
        %v1350 = vadd.f32 0.0, %v1349
        %v1351 = vpop.f32.mrb[0].mxu0
        %v1352 = vadd.f32 0.0, %v1351
        %v1353 = vpop.f32.mrb[0].mxu0
        %v1354 = vadd.f32 0.0, %v1353
        %1355 = vmatprep.mubr.bf16.mxu0 0
        %1356 = vmatmul.mubr.bf16.gmra.mrb[0].mxu0 %v868
        %v1357 = vpop.f32.mrb[0].mxu0
        %v1358 = vadd.f32 0.0, %v1357
        %v1359 = vpop.f32.mrb[0].mxu0
        %v1360 = vadd.f32 0.0, %v1359
        %v1361 = vpop.f32.mrb[0].mxu0
        %v1362 = vadd.f32 0.0, %v1361
        %v1363 = vpop.f32.mrb[0].mxu0
        %v1364 = vadd.f32 0.0, %v1363
        %1365 = vdwg.mxu0
        %1366 = vmatprep.subr.bf16.mxu0 %v1128
        %1367 = vmatpush1.bf16.msra.mxu0 %v1127
        %1368 = vmatprep.subr.bf16.mxu0 %v1136
        %1369 = vmatpush1.bf16.msra.mxu0 %v1135
        %1370 = vmatprep.subr.bf16.mxu0 %v1144
        %1371 = vmatpush1.bf16.msra.mxu0 %v1143
        %1372 = vmatprep.subr.bf16.mxu0 %v1152
        %1373 = vmatpush1.bf16.msra.mxu0 %v1151
        %1374 = vmatprep.subr.bf16.mxu0 %v1160
        %1375 = vmatpush1.bf16.msra.mxu0 %v1159
        %1376 = vmatprep.subr.bf16.mxu0 %v1168
        %1377 = vmatpush1.bf16.msra.mxu0 %v1167
        %1378 = vmatprep.subr.bf16.mxu0 %v1176
        %1379 = vmatpush1.bf16.msra.mxu0 %v1175
        %1380 = vmatprep.subr.bf16.mxu0 %v1184
        %1381 = vmatpush1.bf16.msra.mxu0 %v1183
        %1382 = vmatprep.subr.bf16.mxu0 0
        %1383 = vmatpush1.bf16.msra.mxu0 0
        %1384 = vmatprep.subr.bf16.mxu0 0
        %1385 = vmatpush1.bf16.msra.mxu0 0
        %1386 = vmatprep.subr.bf16.mxu0 0
        %1387 = vmatpush1.bf16.msra.mxu0 0
        %1388 = vmatprep.subr.bf16.mxu0 0
        %1389 = vmatpush1.bf16.msra.mxu0 0
        %1390 = vmatprep.subr.bf16.mxu0 0
        %1391 = vmatpush1.bf16.msra.mxu0 0
        %1392 = vmatprep.subr.bf16.mxu0 0
        %1393 = vmatpush1.bf16.msra.mxu0 0
        %1394 = vmatprep.subr.bf16.mxu0 0
        %1395 = vmatpush1.bf16.msra.mxu0 0
        %1396 = vmatprep.subr.bf16.mxu0 0
        %1397 = vmatpush1.bf16.msra.mxu0 0
        %1398 = vmatprep.mubr.bf16.mxu0 0
        %1399 = vmatmul.mubr.bf16.gmra.mrb[0].mxu0 %v861
        %v1400 = vpop.f32.mrb[0].mxu0
        %v1401 = vadd.f32 0.0, %v1400
        %v1402 = vpop.f32.mrb[0].mxu0
        %v1403 = vadd.f32 0.0, %v1402
        %v1404 = vpop.f32.mrb[0].mxu0
        %v1405 = vadd.f32 0.0, %v1404
        %v1406 = vpop.f32.mrb[0].mxu0
        %v1407 = vadd.f32 0.0, %v1406
        %1408 = vmatprep.mubr.bf16.mxu0 0
        %1409 = vmatmul.mubr.bf16.gmra.mrb[0].mxu0 %v862
        %v1410 = vpop.f32.mrb[0].mxu0
        %v1411 = vadd.f32 0.0, %v1410
        %v1412 = vpop.f32.mrb[0].mxu0
        %v1413 = vadd.f32 0.0, %v1412
        %v1414 = vpop.f32.mrb[0].mxu0
        %v1415 = vadd.f32 0.0, %v1414
        %v1416 = vpop.f32.mrb[0].mxu0
        %v1417 = vadd.f32 0.0, %v1416
        %1418 = vmatprep.mubr.bf16.mxu0 0
        %1419 = vmatmul.mubr.bf16.gmra.mrb[0].mxu0 %v863
        %v1420 = vpop.f32.mrb[0].mxu0
        %v1421 = vadd.f32 0.0, %v1420
        %v1422 = vpop.f32.mrb[0].mxu0
        %v1423 = vadd.f32 0.0, %v1422
        %v1424 = vpop.f32.mrb[0].mxu0
        %v1425 = vadd.f32 0.0, %v1424
        %v1426 = vpop.f32.mrb[0].mxu0
        %v1427 = vadd.f32 0.0, %v1426
        %1428 = vmatprep.mubr.bf16.mxu0 0
        %1429 = vmatmul.mubr.bf16.gmra.mrb[0].mxu0 %v864
        %v1430 = vpop.f32.mrb[0].mxu0
        %v1431 = vadd.f32 0.0, %v1430
        %v1432 = vpop.f32.mrb[0].mxu0
        %v1433 = vadd.f32 0.0, %v1432
        %v1434 = vpop.f32.mrb[0].mxu0
        %v1435 = vadd.f32 0.0, %v1434
        %v1436 = vpop.f32.mrb[0].mxu0
        %v1437 = vadd.f32 0.0, %v1436
        %1438 = vmatprep.mubr.bf16.mxu0 0
        %1439 = vmatmul.mubr.bf16.gmra.mrb[0].mxu0 %v865
        %v1440 = vpop.f32.mrb[0].mxu0
        %v1441 = vadd.f32 0.0, %v1440
        %v1442 = vpop.f32.mrb[0].mxu0
        %v1443 = vadd.f32 0.0, %v1442
        %v1444 = vpop.f32.mrb[0].mxu0
        %v1445 = vadd.f32 0.0, %v1444
        %v1446 = vpop.f32.mrb[0].mxu0
        %v1447 = vadd.f32 0.0, %v1446
        %1448 = vmatprep.mubr.bf16.mxu0 0
        %1449 = vmatmul.mubr.bf16.gmra.mrb[0].mxu0 %v866
        %v1450 = vpop.f32.mrb[0].mxu0
        %v1451 = vadd.f32 0.0, %v1450
        %v1452 = vpop.f32.mrb[0].mxu0
        %v1453 = vadd.f32 0.0, %v1452
        %v1454 = vpop.f32.mrb[0].mxu0
        %v1455 = vadd.f32 0.0, %v1454
        %v1456 = vpop.f32.mrb[0].mxu0
        %v1457 = vadd.f32 0.0, %v1456
        %1458 = vmatprep.mubr.bf16.mxu0 0
        %1459 = vmatmul.mubr.bf16.gmra.mrb[0].mxu0 %v867
        %v1460 = vpop.f32.mrb[0].mxu0
        %v1461 = vadd.f32 0.0, %v1460
        %v1462 = vpop.f32.mrb[0].mxu0
        %v1463 = vadd.f32 0.0, %v1462
        %v1464 = vpop.f32.mrb[0].mxu0
        %v1465 = vadd.f32 0.0, %v1464
        %v1466 = vpop.f32.mrb[0].mxu0
        %v1467 = vadd.f32 0.0, %v1466
        %1468 = vmatprep.mubr.bf16.mxu0 0
        %1469 = vmatmul.mubr.bf16.gmra.mrb[0].mxu0 %v868
        %v1470 = vpop.f32.mrb[0].mxu0
        %v1471 = vadd.f32 0.0, %v1470
        %v1472 = vpop.f32.mrb[0].mxu0
        %v1473 = vadd.f32 0.0, %v1472
        %v1474 = vpop.f32.mrb[0].mxu0
        %v1475 = vadd.f32 0.0, %v1474
        %v1476 = vpop.f32.mrb[0].mxu0
        %v1477 = vadd.f32 0.0, %v1476
        %1478 = vdwg.mxu0
        %1479 = vmatprep.subr.bf16.mxu0 %v1130
        %1480 = vmatpush1.bf16.msra.mxu0 %v1129
        %1481 = vmatprep.subr.bf16.mxu0 %v1138
        %1482 = vmatpush1.bf16.msra.mxu0 %v1137
        %1483 = vmatprep.subr.bf16.mxu0 %v1146
        %1484 = vmatpush1.bf16.msra.mxu0 %v1145
        %1485 = vmatprep.subr.bf16.mxu0 %v1154
        %1486 = vmatpush1.bf16.msra.mxu0 %v1153
        %1487 = vmatprep.subr.bf16.mxu0 %v1162
        %1488 = vmatpush1.bf16.msra.mxu0 %v1161
        %1489 = vmatprep.subr.bf16.mxu0 %v1170
        %1490 = vmatpush1.bf16.msra.mxu0 %v1169
        %1491 = vmatprep.subr.bf16.mxu0 %v1178
        %1492 = vmatpush1.bf16.msra.mxu0 %v1177
        %1493 = vmatprep.subr.bf16.mxu0 %v1186
        %1494 = vmatpush1.bf16.msra.mxu0 %v1185
        %1495 = vmatprep.subr.bf16.mxu0 0
        %1496 = vmatpush1.bf16.msra.mxu0 0
        %1497 = vmatprep.subr.bf16.mxu0 0
        %1498 = vmatpush1.bf16.msra.mxu0 0
        %1499 = vmatprep.subr.bf16.mxu0 0
        %1500 = vmatpush1.bf16.msra.mxu0 0
        %1501 = vmatprep.subr.bf16.mxu0 0
        %1502 = vmatpush1.bf16.msra.mxu0 0
        %1503 = vmatprep.subr.bf16.mxu0 0
        %1504 = vmatpush1.bf16.msra.mxu0 0
        %1505 = vmatprep.subr.bf16.mxu0 0
        %1506 = vmatpush1.bf16.msra.mxu0 0
        %1507 = vmatprep.subr.bf16.mxu0 0
        %1508 = vmatpush1.bf16.msra.mxu0 0
        %1509 = vmatprep.subr.bf16.mxu0 0
        %1510 = vmatpush1.bf16.msra.mxu0 0
        %1511 = vmatprep.mubr.bf16.mxu0 0
        %1512 = vmatmul.mubr.bf16.gmra.mrb[0].mxu0 %v861
        %v1513 = vpop.f32.mrb[0].mxu0
        %v1514 = vadd.f32 0.0, %v1513
        %v1515 = vpop.f32.mrb[0].mxu0
        %v1516 = vadd.f32 0.0, %v1515
        %v1517 = vpop.f32.mrb[0].mxu0
        %v1518 = vadd.f32 0.0, %v1517
        %v1519 = vpop.f32.mrb[0].mxu0
        %v1520 = vadd.f32 0.0, %v1519
        %1521 = vmatprep.mubr.bf16.mxu0 0
        %1522 = vmatmul.mubr.bf16.gmra.mrb[0].mxu0 %v862
        %v1523 = vpop.f32.mrb[0].mxu0
        %v1524 = vadd.f32 0.0, %v1523
        %v1525 = vpop.f32.mrb[0].mxu0
        %v1526 = vadd.f32 0.0, %v1525
        %v1527 = vpop.f32.mrb[0].mxu0
        %v1528 = vadd.f32 0.0, %v1527
        %v1529 = vpop.f32.mrb[0].mxu0
        %v1530 = vadd.f32 0.0, %v1529
        %1531 = vmatprep.mubr.bf16.mxu0 0
        %1532 = vmatmul.mubr.bf16.gmra.mrb[0].mxu0 %v863
        %v1533 = vpop.f32.mrb[0].mxu0
        %v1534 = vadd.f32 0.0, %v1533
        %v1535 = vpop.f32.mrb[0].mxu0
        %v1536 = vadd.f32 0.0, %v1535
        %v1537 = vpop.f32.mrb[0].mxu0
        %v1538 = vadd.f32 0.0, %v1537
        %v1539 = vpop.f32.mrb[0].mxu0
        %v1540 = vadd.f32 0.0, %v1539
        %1541 = vmatprep.mubr.bf16.mxu0 0
        %1542 = vmatmul.mubr.bf16.gmra.mrb[0].mxu0 %v864
        %v1543 = vpop.f32.mrb[0].mxu0
        %v1544 = vadd.f32 0.0, %v1543
        %v1545 = vpop.f32.mrb[0].mxu0
        %v1546 = vadd.f32 0.0, %v1545
        %v1547 = vpop.f32.mrb[0].mxu0
        %v1548 = vadd.f32 0.0, %v1547
        %v1549 = vpop.f32.mrb[0].mxu0
        %v1550 = vadd.f32 0.0, %v1549
        %1551 = vmatprep.mubr.bf16.mxu0 0
        %1552 = vmatmul.mubr.bf16.gmra.mrb[0].mxu0 %v865
        %v1553 = vpop.f32.mrb[0].mxu0
        %v1554 = vadd.f32 0.0, %v1553
        %v1555 = vpop.f32.mrb[0].mxu0
        %v1556 = vadd.f32 0.0, %v1555
        %v1557 = vpop.f32.mrb[0].mxu0
        %v1558 = vadd.f32 0.0, %v1557
        %v1559 = vpop.f32.mrb[0].mxu0
        %v1560 = vadd.f32 0.0, %v1559
        %1561 = vmatprep.mubr.bf16.mxu0 0
        %1562 = vmatmul.mubr.bf16.gmra.mrb[0].mxu0 %v866
        %v1563 = vpop.f32.mrb[0].mxu0
        %v1564 = vadd.f32 0.0, %v1563
        %v1565 = vpop.f32.mrb[0].mxu0
        %v1566 = vadd.f32 0.0, %v1565
        %v1567 = vpop.f32.mrb[0].mxu0
        %v1568 = vadd.f32 0.0, %v1567
        %v1569 = vpop.f32.mrb[0].mxu0
        %v1570 = vadd.f32 0.0, %v1569
        %1571 = vmatprep.mubr.bf16.mxu0 0
        %1572 = vmatmul.mubr.bf16.gmra.mrb[0].mxu0 %v867
        %v1573 = vpop.f32.mrb[0].mxu0
        %v1574 = vadd.f32 0.0, %v1573
        %v1575 = vpop.f32.mrb[0].mxu0
        %v1576 = vadd.f32 0.0, %v1575
        %v1577 = vpop.f32.mrb[0].mxu0
        %v1578 = vadd.f32 0.0, %v1577
        %v1579 = vpop.f32.mrb[0].mxu0
        %v1580 = vadd.f32 0.0, %v1579
        %1581 = vmatprep.mubr.bf16.mxu0 0
        %1582 = vmatmul.mubr.bf16.gmra.mrb[0].mxu0 %v868
        %v1583 = vpop.f32.mrb[0].mxu0
        %v1584 = vadd.f32 0.0, %v1583
        %v1585 = vpop.f32.mrb[0].mxu0
        %v1586 = vadd.f32 0.0, %v1585
        %v1587 = vpop.f32.mrb[0].mxu0
        %v1588 = vadd.f32 0.0, %v1587
        %v1589 = vpop.f32.mrb[0].mxu0
        %v1590 = vadd.f32 0.0, %v1589
        %1591 = vdwg.mxu0
        %1592 = vmatprep.subr.bf16.mxu0 %v1132
        %1593 = vmatpush1.bf16.msra.mxu0 %v1131
        %1594 = vmatprep.subr.bf16.mxu0 %v1140
        %1595 = vmatpush1.bf16.msra.mxu0 %v1139
        %1596 = vmatprep.subr.bf16.mxu0 %v1148
        %1597 = vmatpush1.bf16.msra.mxu0 %v1147
        %1598 = vmatprep.subr.bf16.mxu0 %v1156
        %1599 = vmatpush1.bf16.msra.mxu0 %v1155
        %1600 = vmatprep.subr.bf16.mxu0 %v1164
        %1601 = vmatpush1.bf16.msra.mxu0 %v1163
        %1602 = vmatprep.subr.bf16.mxu0 %v1172
        %1603 = vmatpush1.bf16.msra.mxu0 %v1171
        %1604 = vmatprep.subr.bf16.mxu0 %v1180
        %1605 = vmatpush1.bf16.msra.mxu0 %v1179
        %1606 = vmatprep.subr.bf16.mxu0 %v1188
        %1607 = vmatpush1.bf16.msra.mxu0 %v1187
        %1608 = vmatprep.subr.bf16.mxu0 0
        %1609 = vmatpush1.bf16.msra.mxu0 0
        %1610 = vmatprep.subr.bf16.mxu0 0
        %1611 = vmatpush1.bf16.msra.mxu0 0
        %1612 = vmatprep.subr.bf16.mxu0 0
        %1613 = vmatpush1.bf16.msra.mxu0 0
        %1614 = vmatprep.subr.bf16.mxu0 0
        %1615 = vmatpush1.bf16.msra.mxu0 0
        %1616 = vmatprep.subr.bf16.mxu0 0
        %1617 = vmatpush1.bf16.msra.mxu0 0
        %1618 = vmatprep.subr.bf16.mxu0 0
        %1619 = vmatpush1.bf16.msra.mxu0 0
        %1620 = vmatprep.subr.bf16.mxu0 0
        %1621 = vmatpush1.bf16.msra.mxu0 0
        %1622 = vmatprep.subr.bf16.mxu0 0
        %1623 = vmatpush1.bf16.msra.mxu0 0
        %1624 = vmatprep.mubr.bf16.mxu0 0
        %1625 = vmatmul.mubr.bf16.gmra.mrb[0].mxu0 %v861
        %v1626 = vpop.f32.mrb[0].mxu0
        %v1627 = vadd.f32 0.0, %v1626
        %v1628 = vpop.f32.mrb[0].mxu0
        %v1629 = vadd.f32 0.0, %v1628
        %v1630 = vpop.f32.mrb[0].mxu0
        %v1631 = vadd.f32 0.0, %v1630
        %v1632 = vpop.f32.mrb[0].mxu0
        %v1633 = vadd.f32 0.0, %v1632
        %1634 = vmatprep.mubr.bf16.mxu0 0
        %1635 = vmatmul.mubr.bf16.gmra.mrb[0].mxu0 %v862
        %v1636 = vpop.f32.mrb[0].mxu0
        %v1637 = vadd.f32 0.0, %v1636
        %v1638 = vpop.f32.mrb[0].mxu0
        %v1639 = vadd.f32 0.0, %v1638
        %v1640 = vpop.f32.mrb[0].mxu0
        %v1641 = vadd.f32 0.0, %v1640
        %v1642 = vpop.f32.mrb[0].mxu0
        %v1643 = vadd.f32 0.0, %v1642
        %1644 = vmatprep.mubr.bf16.mxu0 0
        %1645 = vmatmul.mubr.bf16.gmra.mrb[0].mxu0 %v863
        %v1646 = vpop.f32.mrb[0].mxu0
        %v1647 = vadd.f32 0.0, %v1646
        %v1648 = vpop.f32.mrb[0].mxu0
        %v1649 = vadd.f32 0.0, %v1648
        %v1650 = vpop.f32.mrb[0].mxu0
        %v1651 = vadd.f32 0.0, %v1650
        %v1652 = vpop.f32.mrb[0].mxu0
        %v1653 = vadd.f32 0.0, %v1652
        %1654 = vmatprep.mubr.bf16.mxu0 0
        %1655 = vmatmul.mubr.bf16.gmra.mrb[0].mxu0 %v864
        %v1656 = vpop.f32.mrb[0].mxu0
        %v1657 = vadd.f32 0.0, %v1656
        %v1658 = vpop.f32.mrb[0].mxu0
        %v1659 = vadd.f32 0.0, %v1658
        %v1660 = vpop.f32.mrb[0].mxu0
        %v1661 = vadd.f32 0.0, %v1660
        %v1662 = vpop.f32.mrb[0].mxu0
        %v1663 = vadd.f32 0.0, %v1662
        %1664 = vmatprep.mubr.bf16.mxu0 0
        %1665 = vmatmul.mubr.bf16.gmra.mrb[0].mxu0 %v865
        %v1666 = vpop.f32.mrb[0].mxu0
        %v1667 = vadd.f32 0.0, %v1666
        %v1668 = vpop.f32.mrb[0].mxu0
        %v1669 = vadd.f32 0.0, %v1668
        %v1670 = vpop.f32.mrb[0].mxu0
        %v1671 = vadd.f32 0.0, %v1670
        %v1672 = vpop.f32.mrb[0].mxu0
        %v1673 = vadd.f32 0.0, %v1672
        %1674 = vmatprep.mubr.bf16.mxu0 0
        %1675 = vmatmul.mubr.bf16.gmra.mrb[0].mxu0 %v866
        %v1676 = vpop.f32.mrb[0].mxu0
        %v1677 = vadd.f32 0.0, %v1676
        %v1678 = vpop.f32.mrb[0].mxu0
        %v1679 = vadd.f32 0.0, %v1678
        %v1680 = vpop.f32.mrb[0].mxu0
        %v1681 = vadd.f32 0.0, %v1680
        %v1682 = vpop.f32.mrb[0].mxu0
        %v1683 = vadd.f32 0.0, %v1682
        %1684 = vmatprep.mubr.bf16.mxu0 0
        %1685 = vmatmul.mubr.bf16.gmra.mrb[0].mxu0 %v867
        %v1686 = vpop.f32.mrb[0].mxu0
        %v1687 = vadd.f32 0.0, %v1686
        %v1688 = vpop.f32.mrb[0].mxu0
        %v1689 = vadd.f32 0.0, %v1688
        %v1690 = vpop.f32.mrb[0].mxu0
        %v1691 = vadd.f32 0.0, %v1690
        %v1692 = vpop.f32.mrb[0].mxu0
        %v1693 = vadd.f32 0.0, %v1692
        %1694 = vmatprep.mubr.bf16.mxu0 0
        %1695 = vmatmul.mubr.bf16.gmra.mrb[0].mxu0 %v868
        %v1696 = vpop.f32.mrb[0].mxu0
        %v1697 = vadd.f32 0.0, %v1696
        %v1698 = vpop.f32.mrb[0].mxu0
        %v1699 = vadd.f32 0.0, %v1698
        %v1700 = vpop.f32.mrb[0].mxu0
        %v1701 = vadd.f32 0.0, %v1700
        %v1702 = vpop.f32.mrb[0].mxu0
        %v1703 = vadd.f32 0.0, %v1702
        %1704 = vdwg.mxu0
        %v1705 = vld [vmem:[%s8] sm:$0xff]
        %v1707 = vlaneseq
        %v1708 = vshrl.u32 %v1707, 7
        %v1709 = vsub.s32 0, %v1708
        %v1710 = vrot.slane %v1705, %v1709
        %v1711 = vlaneseq
        %v1712 = vshrl.u32 %v1711, 7
        %v1713 = vsub.s32 1, %v1712
        %v1714 = vrot.slane %v1705, %v1713
        %v1715 = vlaneseq
        %v1716 = vshrl.u32 %v1715, 7
        %v1717 = vsub.s32 2, %v1716
        %v1718 = vrot.slane %v1705, %v1717
        %v1719 = vlaneseq
        %v1720 = vshrl.u32 %v1719, 7
        %v1721 = vsub.s32 3, %v1720
        %v1722 = vrot.slane %v1705, %v1721
        %v1723 = vlaneseq
        %v1724 = vshrl.u32 %v1723, 7
        %v1725 = vsub.s32 4, %v1724
        %v1726 = vrot.slane %v1705, %v1725
        %v1727 = vlaneseq
        %v1728 = vshrl.u32 %v1727, 7
        %v1729 = vsub.s32 5, %v1728
        %v1730 = vrot.slane %v1705, %v1729
        %v1731 = vlaneseq
        %v1732 = vshrl.u32 %v1731, 7
        %v1733 = vsub.s32 6, %v1732
        %v1734 = vrot.slane %v1705, %v1733
        %v1735 = vlaneseq
        %v1736 = vshrl.u32 %v1735, 7
        %v1737 = vsub.s32 7, %v1736
        %v1738 = vrot.slane %v1705, %v1737
        %v1747 = vmul.f32 %v1288, %v1710
        %v1748 = vmul.f32 %v1290, %v1714
        %v1749 = vmul.f32 %v1401, %v1718
        %v1750 = vmul.f32 %v1403, %v1722
        %v1751 = vmul.f32 %v1514, %v1726
        %v1752 = vmul.f32 %v1516, %v1730
        %v1753 = vmul.f32 %v1627, %v1734
        %v1754 = vmul.f32 %v1629, %v1738
        %v1755 = vmul.f32 %v1292, %v1710
        %v1756 = vmul.f32 %v1294, %v1714
        %v1757 = vmul.f32 %v1405, %v1718
        %v1758 = vmul.f32 %v1407, %v1722
        %v1759 = vmul.f32 %v1518, %v1726
        %v1760 = vmul.f32 %v1520, %v1730
        %v1761 = vmul.f32 %v1631, %v1734
        %v1762 = vmul.f32 %v1633, %v1738
        %v1763 = vmul.f32 %v1298, %v1710
        %v1764 = vmul.f32 %v1300, %v1714
        %v1765 = vmul.f32 %v1411, %v1718
        %v1766 = vmul.f32 %v1413, %v1722
        %v1767 = vmul.f32 %v1524, %v1726
        %v1768 = vmul.f32 %v1526, %v1730
        %v1769 = vmul.f32 %v1637, %v1734
        %v1770 = vmul.f32 %v1639, %v1738
        %v1771 = vmul.f32 %v1302, %v1710
        %v1772 = vmul.f32 %v1304, %v1714
        %v1773 = vmul.f32 %v1415, %v1718
        %v1774 = vmul.f32 %v1417, %v1722
        %v1775 = vmul.f32 %v1528, %v1726
        %v1776 = vmul.f32 %v1530, %v1730
        %v1777 = vmul.f32 %v1641, %v1734
        %v1778 = vmul.f32 %v1643, %v1738
        %v1779 = vmul.f32 %v1308, %v1710
        %v1780 = vmul.f32 %v1310, %v1714
        %v1781 = vmul.f32 %v1421, %v1718
        %v1782 = vmul.f32 %v1423, %v1722
        %v1783 = vmul.f32 %v1534, %v1726
        %v1784 = vmul.f32 %v1536, %v1730
        %v1785 = vmul.f32 %v1647, %v1734
        %v1786 = vmul.f32 %v1649, %v1738
        %v1787 = vmul.f32 %v1312, %v1710
        %v1788 = vmul.f32 %v1314, %v1714
        %v1789 = vmul.f32 %v1425, %v1718
        %v1790 = vmul.f32 %v1427, %v1722
        %v1791 = vmul.f32 %v1538, %v1726
        %v1792 = vmul.f32 %v1540, %v1730
        %v1793 = vmul.f32 %v1651, %v1734
        %v1794 = vmul.f32 %v1653, %v1738
        %v1795 = vmul.f32 %v1318, %v1710
        %v1796 = vmul.f32 %v1320, %v1714
        %v1797 = vmul.f32 %v1431, %v1718
        %v1798 = vmul.f32 %v1433, %v1722
        %v1799 = vmul.f32 %v1544, %v1726
        %v1800 = vmul.f32 %v1546, %v1730
        %v1801 = vmul.f32 %v1657, %v1734
        %v1802 = vmul.f32 %v1659, %v1738
        %v1803 = vmul.f32 %v1322, %v1710
        %v1804 = vmul.f32 %v1324, %v1714
        %v1805 = vmul.f32 %v1435, %v1718
        %v1806 = vmul.f32 %v1437, %v1722
        %v1807 = vmul.f32 %v1548, %v1726
        %v1808 = vmul.f32 %v1550, %v1730
        %v1809 = vmul.f32 %v1661, %v1734
        %v1810 = vmul.f32 %v1663, %v1738
        %v1811 = vmul.f32 %v1328, %v1710
        %v1812 = vmul.f32 %v1330, %v1714
        %v1813 = vmul.f32 %v1441, %v1718
        %v1814 = vmul.f32 %v1443, %v1722
        %v1815 = vmul.f32 %v1554, %v1726
        %v1816 = vmul.f32 %v1556, %v1730
        %v1817 = vmul.f32 %v1667, %v1734
        %v1818 = vmul.f32 %v1669, %v1738
        %v1819 = vmul.f32 %v1332, %v1710
        %v1820 = vmul.f32 %v1334, %v1714
        %v1821 = vmul.f32 %v1445, %v1718
        %v1822 = vmul.f32 %v1447, %v1722
        %v1823 = vmul.f32 %v1558, %v1726
        %v1824 = vmul.f32 %v1560, %v1730
        %v1825 = vmul.f32 %v1671, %v1734
        %v1826 = vmul.f32 %v1673, %v1738
        %v1827 = vmul.f32 %v1338, %v1710
        %v1828 = vmul.f32 %v1340, %v1714
        %v1829 = vmul.f32 %v1451, %v1718
        %v1830 = vmul.f32 %v1453, %v1722
        %v1831 = vmul.f32 %v1564, %v1726
        %v1832 = vmul.f32 %v1566, %v1730
        %v1833 = vmul.f32 %v1677, %v1734
        %v1834 = vmul.f32 %v1679, %v1738
        %v1835 = vmul.f32 %v1342, %v1710
        %v1836 = vmul.f32 %v1344, %v1714
        %v1837 = vmul.f32 %v1455, %v1718
        %v1838 = vmul.f32 %v1457, %v1722
        %v1839 = vmul.f32 %v1568, %v1726
        %v1840 = vmul.f32 %v1570, %v1730
        %v1841 = vmul.f32 %v1681, %v1734
        %v1842 = vmul.f32 %v1683, %v1738
        %v1843 = vmul.f32 %v1348, %v1710
        %v1844 = vmul.f32 %v1350, %v1714
        %v1845 = vmul.f32 %v1461, %v1718
        %v1846 = vmul.f32 %v1463, %v1722
        %v1847 = vmul.f32 %v1574, %v1726
        %v1848 = vmul.f32 %v1576, %v1730
        %v1849 = vmul.f32 %v1687, %v1734
        %v1850 = vmul.f32 %v1689, %v1738
        %v1851 = vmul.f32 %v1352, %v1710
        %v1852 = vmul.f32 %v1354, %v1714
        %v1853 = vmul.f32 %v1465, %v1718
        %v1854 = vmul.f32 %v1467, %v1722
        %v1855 = vmul.f32 %v1578, %v1726
        %v1856 = vmul.f32 %v1580, %v1730
        %v1857 = vmul.f32 %v1691, %v1734
        %v1858 = vmul.f32 %v1693, %v1738
        %v1859 = vmul.f32 %v1358, %v1710
        %v1860 = vmul.f32 %v1360, %v1714
        %v1861 = vmul.f32 %v1471, %v1718
        %v1862 = vmul.f32 %v1473, %v1722
        %v1863 = vmul.f32 %v1584, %v1726
        %v1864 = vmul.f32 %v1586, %v1730
        %v1865 = vmul.f32 %v1697, %v1734
        %v1866 = vmul.f32 %v1699, %v1738
        %v1867 = vmul.f32 %v1362, %v1710
        %v1868 = vmul.f32 %v1364, %v1714
        %v1869 = vmul.f32 %v1475, %v1718
        %v1870 = vmul.f32 %v1477, %v1722
        %v1871 = vmul.f32 %v1588, %v1726
        %v1872 = vmul.f32 %v1590, %v1730
        %v1873 = vmul.f32 %v1701, %v1734
        %v1874 = vmul.f32 %v1703, %v1738
        %v1875 = vld [vmem:[%s9] sm:$0xff]
        %v1877 = vlaneseq
        %v1878 = vshrl.u32 %v1877, 7
        %v1879 = vsub.s32 0, %v1878
        %v1880 = vrot.slane %v1875, %v1879
        %v1881 = vlaneseq
        %v1882 = vshrl.u32 %v1881, 7
        %v1883 = vsub.s32 1, %v1882
        %v1884 = vrot.slane %v1875, %v1883
        %v1885 = vlaneseq
        %v1886 = vshrl.u32 %v1885, 7
        %v1887 = vsub.s32 2, %v1886
        %v1888 = vrot.slane %v1875, %v1887
        %v1889 = vlaneseq
        %v1890 = vshrl.u32 %v1889, 7
        %v1891 = vsub.s32 3, %v1890
        %v1892 = vrot.slane %v1875, %v1891
        %v1893 = vlaneseq
        %v1894 = vshrl.u32 %v1893, 7
        %v1895 = vsub.s32 4, %v1894
        %v1896 = vrot.slane %v1875, %v1895
        %v1897 = vlaneseq
        %v1898 = vshrl.u32 %v1897, 7
        %v1899 = vsub.s32 5, %v1898
        %v1900 = vrot.slane %v1875, %v1899
        %v1901 = vlaneseq
        %v1902 = vshrl.u32 %v1901, 7
        %v1903 = vsub.s32 6, %v1902
        %v1904 = vrot.slane %v1875, %v1903
        %v1905 = vlaneseq
        %v1906 = vshrl.u32 %v1905, 7
        %v1907 = vsub.s32 7, %v1906
        %v1908 = vrot.slane %v1875, %v1907
        %v1917 = vadd.f32 %v1747, %v1880
        %v1918 = vadd.f32 %v1748, %v1884
        %v1919 = vadd.f32 %v1749, %v1888
        %v1920 = vadd.f32 %v1750, %v1892
        %v1921 = vadd.f32 %v1751, %v1896
        %v1922 = vadd.f32 %v1752, %v1900
        %v1923 = vadd.f32 %v1753, %v1904
        %v1924 = vadd.f32 %v1754, %v1908
        %v1925 = vadd.f32 %v1755, %v1880
        %v1926 = vadd.f32 %v1756, %v1884
        %v1927 = vadd.f32 %v1757, %v1888
        %v1928 = vadd.f32 %v1758, %v1892
        %v1929 = vadd.f32 %v1759, %v1896
        %v1930 = vadd.f32 %v1760, %v1900
        %v1931 = vadd.f32 %v1761, %v1904
        %v1932 = vadd.f32 %v1762, %v1908
        %v1933 = vadd.f32 %v1763, %v1880
        %v1934 = vadd.f32 %v1764, %v1884
        %v1935 = vadd.f32 %v1765, %v1888
        %v1936 = vadd.f32 %v1766, %v1892
        %v1937 = vadd.f32 %v1767, %v1896
        %v1938 = vadd.f32 %v1768, %v1900
        %v1939 = vadd.f32 %v1769, %v1904
        %v1940 = vadd.f32 %v1770, %v1908
        %v1941 = vadd.f32 %v1771, %v1880
        %v1942 = vadd.f32 %v1772, %v1884
        %v1943 = vadd.f32 %v1773, %v1888
        %v1944 = vadd.f32 %v1774, %v1892
        %v1945 = vadd.f32 %v1775, %v1896
        %v1946 = vadd.f32 %v1776, %v1900
        %v1947 = vadd.f32 %v1777, %v1904
        %v1948 = vadd.f32 %v1778, %v1908
        %v1949 = vadd.f32 %v1779, %v1880
        %v1950 = vadd.f32 %v1780, %v1884
        %v1951 = vadd.f32 %v1781, %v1888
        %v1952 = vadd.f32 %v1782, %v1892
        %v1953 = vadd.f32 %v1783, %v1896
        %v1954 = vadd.f32 %v1784, %v1900
        %v1955 = vadd.f32 %v1785, %v1904
        %v1956 = vadd.f32 %v1786, %v1908
        %v1957 = vadd.f32 %v1787, %v1880
        %v1958 = vadd.f32 %v1788, %v1884
        %v1959 = vadd.f32 %v1789, %v1888
        %v1960 = vadd.f32 %v1790, %v1892
        %v1961 = vadd.f32 %v1791, %v1896
        %v1962 = vadd.f32 %v1792, %v1900
        %v1963 = vadd.f32 %v1793, %v1904
        %v1964 = vadd.f32 %v1794, %v1908
        %v1965 = vadd.f32 %v1795, %v1880
        %v1966 = vadd.f32 %v1796, %v1884
        %v1967 = vadd.f32 %v1797, %v1888
        %v1968 = vadd.f32 %v1798, %v1892
        %v1969 = vadd.f32 %v1799, %v1896
        %v1970 = vadd.f32 %v1800, %v1900
        %v1971 = vadd.f32 %v1801, %v1904
        %v1972 = vadd.f32 %v1802, %v1908
        %v1973 = vadd.f32 %v1803, %v1880
        %v1974 = vadd.f32 %v1804, %v1884
        %v1975 = vadd.f32 %v1805, %v1888
        %v1976 = vadd.f32 %v1806, %v1892
        %v1977 = vadd.f32 %v1807, %v1896
        %v1978 = vadd.f32 %v1808, %v1900
        %v1979 = vadd.f32 %v1809, %v1904
        %v1980 = vadd.f32 %v1810, %v1908
        %v1981 = vadd.f32 %v1811, %v1880
        %v1982 = vadd.f32 %v1812, %v1884
        %v1983 = vadd.f32 %v1813, %v1888
        %v1984 = vadd.f32 %v1814, %v1892
        %v1985 = vadd.f32 %v1815, %v1896
        %v1986 = vadd.f32 %v1816, %v1900
        %v1987 = vadd.f32 %v1817, %v1904
        %v1988 = vadd.f32 %v1818, %v1908
        %v1989 = vadd.f32 %v1819, %v1880
        %v1990 = vadd.f32 %v1820, %v1884
        %v1991 = vadd.f32 %v1821, %v1888
        %v1992 = vadd.f32 %v1822, %v1892
        %v1993 = vadd.f32 %v1823, %v1896
        %v1994 = vadd.f32 %v1824, %v1900
        %v1995 = vadd.f32 %v1825, %v1904
        %v1996 = vadd.f32 %v1826, %v1908
        %v1997 = vadd.f32 %v1827, %v1880
        %v1998 = vadd.f32 %v1828, %v1884
        %v1999 = vadd.f32 %v1829, %v1888
        %v2000 = vadd.f32 %v1830, %v1892
        %v2001 = vadd.f32 %v1831, %v1896
        %v2002 = vadd.f32 %v1832, %v1900
        %v2003 = vadd.f32 %v1833, %v1904
        %v2004 = vadd.f32 %v1834, %v1908
        %v2005 = vadd.f32 %v1835, %v1880
        %v2006 = vadd.f32 %v1836, %v1884
        %v2007 = vadd.f32 %v1837, %v1888
        %v2008 = vadd.f32 %v1838, %v1892
        %v2009 = vadd.f32 %v1839, %v1896
        %v2010 = vadd.f32 %v1840, %v1900
        %v2011 = vadd.f32 %v1841, %v1904
        %v2012 = vadd.f32 %v1842, %v1908
        %v2013 = vadd.f32 %v1843, %v1880
        %v2014 = vadd.f32 %v1844, %v1884
        %v2015 = vadd.f32 %v1845, %v1888
        %v2016 = vadd.f32 %v1846, %v1892
        %v2017 = vadd.f32 %v1847, %v1896
        %v2018 = vadd.f32 %v1848, %v1900
        %v2019 = vadd.f32 %v1849, %v1904
        %v2020 = vadd.f32 %v1850, %v1908
        %v2021 = vadd.f32 %v1851, %v1880
        %v2022 = vadd.f32 %v1852, %v1884
        %v2023 = vadd.f32 %v1853, %v1888
        %v2024 = vadd.f32 %v1854, %v1892
        %v2025 = vadd.f32 %v1855, %v1896
        %v2026 = vadd.f32 %v1856, %v1900
        %v2027 = vadd.f32 %v1857, %v1904
        %v2028 = vadd.f32 %v1858, %v1908
        %v2029 = vadd.f32 %v1859, %v1880
        %v2030 = vadd.f32 %v1860, %v1884
        %v2031 = vadd.f32 %v1861, %v1888
        %v2032 = vadd.f32 %v1862, %v1892
        %v2033 = vadd.f32 %v1863, %v1896
        %v2034 = vadd.f32 %v1864, %v1900
        %v2035 = vadd.f32 %v1865, %v1904
        %v2036 = vadd.f32 %v1866, %v1908
        %v2037 = vadd.f32 %v1867, %v1880
        %v2038 = vadd.f32 %v1868, %v1884
        %v2039 = vadd.f32 %v1869, %v1888
        %v2040 = vadd.f32 %v1870, %v1892
        %v2041 = vadd.f32 %v1871, %v1896
        %v2042 = vadd.f32 %v1872, %v1900
        %v2043 = vadd.f32 %v1873, %v1904
        %v2044 = vadd.f32 %v1874, %v1908
        %v2045 = vmax.f32 %v1917, 0.0
        %v2046 = vmax.f32 %v1918, 0.0
        %v2047 = vmax.f32 %v1919, 0.0
        %v2048 = vmax.f32 %v1920, 0.0
        %v2049 = vmax.f32 %v1921, 0.0
        %v2050 = vmax.f32 %v1922, 0.0
        %v2051 = vmax.f32 %v1923, 0.0
        %v2052 = vmax.f32 %v1924, 0.0
        %v2053 = vmax.f32 %v1925, 0.0
        %v2054 = vmax.f32 %v1926, 0.0
        %v2055 = vmax.f32 %v1927, 0.0
        %v2056 = vmax.f32 %v1928, 0.0
        %v2057 = vmax.f32 %v1929, 0.0
        %v2058 = vmax.f32 %v1930, 0.0
        %v2059 = vmax.f32 %v1931, 0.0
        %v2060 = vmax.f32 %v1932, 0.0
        %v2061 = vmax.f32 %v1933, 0.0
        %v2062 = vmax.f32 %v1934, 0.0
        %v2063 = vmax.f32 %v1935, 0.0
        %v2064 = vmax.f32 %v1936, 0.0
        %v2065 = vmax.f32 %v1937, 0.0
        %v2066 = vmax.f32 %v1938, 0.0
        %v2067 = vmax.f32 %v1939, 0.0
        %v2068 = vmax.f32 %v1940, 0.0
        %v2069 = vmax.f32 %v1941, 0.0
        %v2070 = vmax.f32 %v1942, 0.0
        %v2071 = vmax.f32 %v1943, 0.0
        %v2072 = vmax.f32 %v1944, 0.0
        %v2073 = vmax.f32 %v1945, 0.0
        %v2074 = vmax.f32 %v1946, 0.0
        %v2075 = vmax.f32 %v1947, 0.0
        %v2076 = vmax.f32 %v1948, 0.0
        %v2077 = vmax.f32 %v1949, 0.0
        %v2078 = vmax.f32 %v1950, 0.0
        %v2079 = vmax.f32 %v1951, 0.0
        %v2080 = vmax.f32 %v1952, 0.0
        %v2081 = vmax.f32 %v1953, 0.0
        %v2082 = vmax.f32 %v1954, 0.0
        %v2083 = vmax.f32 %v1955, 0.0
        %v2084 = vmax.f32 %v1956, 0.0
        %v2085 = vmax.f32 %v1957, 0.0
        %v2086 = vmax.f32 %v1958, 0.0
        %v2087 = vmax.f32 %v1959, 0.0
        %v2088 = vmax.f32 %v1960, 0.0
        %v2089 = vmax.f32 %v1961, 0.0
        %v2090 = vmax.f32 %v1962, 0.0
        %v2091 = vmax.f32 %v1963, 0.0
        %v2092 = vmax.f32 %v1964, 0.0
        %v2093 = vmax.f32 %v1965, 0.0
        %v2094 = vmax.f32 %v1966, 0.0
        %v2095 = vmax.f32 %v1967, 0.0
        %v2096 = vmax.f32 %v1968, 0.0
        %v2097 = vmax.f32 %v1969, 0.0
        %v2098 = vmax.f32 %v1970, 0.0
        %v2099 = vmax.f32 %v1971, 0.0
        %v2100 = vmax.f32 %v1972, 0.0
        %v2101 = vmax.f32 %v1973, 0.0
        %v2102 = vmax.f32 %v1974, 0.0
        %v2103 = vmax.f32 %v1975, 0.0
        %v2104 = vmax.f32 %v1976, 0.0
        %v2105 = vmax.f32 %v1977, 0.0
        %v2106 = vmax.f32 %v1978, 0.0
        %v2107 = vmax.f32 %v1979, 0.0
        %v2108 = vmax.f32 %v1980, 0.0
        %v2109 = vmax.f32 %v1981, 0.0
        %v2110 = vmax.f32 %v1982, 0.0
        %v2111 = vmax.f32 %v1983, 0.0
        %v2112 = vmax.f32 %v1984, 0.0
        %v2113 = vmax.f32 %v1985, 0.0
        %v2114 = vmax.f32 %v1986, 0.0
        %v2115 = vmax.f32 %v1987, 0.0
        %v2116 = vmax.f32 %v1988, 0.0
        %v2117 = vmax.f32 %v1989, 0.0
        %v2118 = vmax.f32 %v1990, 0.0
        %v2119 = vmax.f32 %v1991, 0.0
        %v2120 = vmax.f32 %v1992, 0.0
        %v2121 = vmax.f32 %v1993, 0.0
        %v2122 = vmax.f32 %v1994, 0.0
        %v2123 = vmax.f32 %v1995, 0.0
        %v2124 = vmax.f32 %v1996, 0.0
        %v2125 = vmax.f32 %v1997, 0.0
        %v2126 = vmax.f32 %v1998, 0.0
        %v2127 = vmax.f32 %v1999, 0.0
        %v2128 = vmax.f32 %v2000, 0.0
        %v2129 = vmax.f32 %v2001, 0.0
        %v2130 = vmax.f32 %v2002, 0.0
        %v2131 = vmax.f32 %v2003, 0.0
        %v2132 = vmax.f32 %v2004, 0.0
        %v2133 = vmax.f32 %v2005, 0.0
        %v2134 = vmax.f32 %v2006, 0.0
        %v2135 = vmax.f32 %v2007, 0.0
        %v2136 = vmax.f32 %v2008, 0.0
        %v2137 = vmax.f32 %v2009, 0.0
        %v2138 = vmax.f32 %v2010, 0.0
        %v2139 = vmax.f32 %v2011, 0.0
        %v2140 = vmax.f32 %v2012, 0.0
        %v2141 = vmax.f32 %v2013, 0.0
        %v2142 = vmax.f32 %v2014, 0.0
        %v2143 = vmax.f32 %v2015, 0.0
        %v2144 = vmax.f32 %v2016, 0.0
        %v2145 = vmax.f32 %v2017, 0.0
        %v2146 = vmax.f32 %v2018, 0.0
        %v2147 = vmax.f32 %v2019, 0.0
        %v2148 = vmax.f32 %v2020, 0.0
        %v2149 = vmax.f32 %v2021, 0.0
        %v2150 = vmax.f32 %v2022, 0.0
        %v2151 = vmax.f32 %v2023, 0.0
        %v2152 = vmax.f32 %v2024, 0.0
        %v2153 = vmax.f32 %v2025, 0.0
        %v2154 = vmax.f32 %v2026, 0.0
        %v2155 = vmax.f32 %v2027, 0.0
        %v2156 = vmax.f32 %v2028, 0.0
        %v2157 = vmax.f32 %v2029, 0.0
        %v2158 = vmax.f32 %v2030, 0.0
        %v2159 = vmax.f32 %v2031, 0.0
        %v2160 = vmax.f32 %v2032, 0.0
        %v2161 = vmax.f32 %v2033, 0.0
        %v2162 = vmax.f32 %v2034, 0.0
        %v2163 = vmax.f32 %v2035, 0.0
        %v2164 = vmax.f32 %v2036, 0.0
        %v2165 = vmax.f32 %v2037, 0.0
        %v2166 = vmax.f32 %v2038, 0.0
        %v2167 = vmax.f32 %v2039, 0.0
        %v2168 = vmax.f32 %v2040, 0.0
        %v2169 = vmax.f32 %v2041, 0.0
        %v2170 = vmax.f32 %v2042, 0.0
        %v2171 = vmax.f32 %v2043, 0.0
        %v2172 = vmax.f32 %v2044, 0.0
        %v2173 = vld [vmem:[%s375] sm:$0xff]
        %v2174 = vmax.f32 %v2045, %v2053
        %v2175 = vmax.f32 %v2174, %v2061
        %v2176 = vmax.f32 %v2175, %v2069
        %v2177 = vmax.f32 %v2176, %v2077
        %v2178 = vmax.f32 %v2177, %v2085
        %v2179 = vmax.f32 %v2178, %v2093
        %v2180 = vmax.f32 %v2179, %v2101
        %v2181 = vmax.f32 %v2180, %v2109
        %v2182 = vmax.f32 %v2181, %v2117
        %v2183 = vmax.f32 %v2182, %v2125
        %v2184 = vmax.f32 %v2183, %v2133
        %v2185 = vmax.f32 %v2184, %v2141
        %v2186 = vmax.f32 %v2185, %v2149
        %v2187 = vmax.f32 %v2186, %v2157
        %v2188 = vmax.f32 %v2187, %v2165
        %v2189 = vrot.slane %v2188, 4
        %v2190 = vmax.f32 %v2188, %v2189
        %v2191 = vrot.slane %v2190, 2
        %v2192 = vmax.f32 %v2190, %v2191
        %v2193 = vrot.slane %v2192, 1
        %v2194 = vmax.f32 %v2192, %v2193
        %v2195 = vmax.f32 %v2046, %v2054
        %v2196 = vmax.f32 %v2195, %v2062
        %v2197 = vmax.f32 %v2196, %v2070
        %v2198 = vmax.f32 %v2197, %v2078
        %v2199 = vmax.f32 %v2198, %v2086
        %v2200 = vmax.f32 %v2199, %v2094
        %v2201 = vmax.f32 %v2200, %v2102
        %v2202 = vmax.f32 %v2201, %v2110
        %v2203 = vmax.f32 %v2202, %v2118
        %v2204 = vmax.f32 %v2203, %v2126
        %v2205 = vmax.f32 %v2204, %v2134
        %v2206 = vmax.f32 %v2205, %v2142
        %v2207 = vmax.f32 %v2206, %v2150
        %v2208 = vmax.f32 %v2207, %v2158
        %v2209 = vmax.f32 %v2208, %v2166
        %v2210 = vrot.slane %v2209, 4
        %v2211 = vmax.f32 %v2209, %v2210
        %v2212 = vrot.slane %v2211, 2
        %v2213 = vmax.f32 %v2211, %v2212
        %v2214 = vrot.slane %v2213, 1
        %v2215 = vmax.f32 %v2213, %v2214
        %v2216 = vmax.f32 %v2047, %v2055
        %v2217 = vmax.f32 %v2216, %v2063
        %v2218 = vmax.f32 %v2217, %v2071
        %v2219 = vmax.f32 %v2218, %v2079
        %v2220 = vmax.f32 %v2219, %v2087
        %v2221 = vmax.f32 %v2220, %v2095
        %v2222 = vmax.f32 %v2221, %v2103
        %v2223 = vmax.f32 %v2222, %v2111
        %v2224 = vmax.f32 %v2223, %v2119
        %v2225 = vmax.f32 %v2224, %v2127
        %v2226 = vmax.f32 %v2225, %v2135
        %v2227 = vmax.f32 %v2226, %v2143
        %v2228 = vmax.f32 %v2227, %v2151
        %v2229 = vmax.f32 %v2228, %v2159
        %v2230 = vmax.f32 %v2229, %v2167
        %v2231 = vrot.slane %v2230, 4
        %v2232 = vmax.f32 %v2230, %v2231
        %v2233 = vrot.slane %v2232, 2
        %v2234 = vmax.f32 %v2232, %v2233
        %v2235 = vrot.slane %v2234, 1
        %v2236 = vmax.f32 %v2234, %v2235
        %v2237 = vmax.f32 %v2048, %v2056
        %v2238 = vmax.f32 %v2237, %v2064
        %v2239 = vmax.f32 %v2238, %v2072
        %v2240 = vmax.f32 %v2239, %v2080
        %v2241 = vmax.f32 %v2240, %v2088
        %v2242 = vmax.f32 %v2241, %v2096
        %v2243 = vmax.f32 %v2242, %v2104
        %v2244 = vmax.f32 %v2243, %v2112
        %v2245 = vmax.f32 %v2244, %v2120
        %v2246 = vmax.f32 %v2245, %v2128
        %v2247 = vmax.f32 %v2246, %v2136
        %v2248 = vmax.f32 %v2247, %v2144
        %v2249 = vmax.f32 %v2248, %v2152
        %v2250 = vmax.f32 %v2249, %v2160
        %v2251 = vmax.f32 %v2250, %v2168
        %v2252 = vrot.slane %v2251, 4
        %v2253 = vmax.f32 %v2251, %v2252
        %v2254 = vrot.slane %v2253, 2
        %v2255 = vmax.f32 %v2253, %v2254
        %v2256 = vrot.slane %v2255, 1
        %v2257 = vmax.f32 %v2255, %v2256
        %v2258 = vmax.f32 %v2049, %v2057
        %v2259 = vmax.f32 %v2258, %v2065
        %v2260 = vmax.f32 %v2259, %v2073
        %v2261 = vmax.f32 %v2260, %v2081
        %v2262 = vmax.f32 %v2261, %v2089
        %v2263 = vmax.f32 %v2262, %v2097
        %v2264 = vmax.f32 %v2263, %v2105
        %v2265 = vmax.f32 %v2264, %v2113
        %v2266 = vmax.f32 %v2265, %v2121
        %v2267 = vmax.f32 %v2266, %v2129
        %v2268 = vmax.f32 %v2267, %v2137
        %v2269 = vmax.f32 %v2268, %v2145
        %v2270 = vmax.f32 %v2269, %v2153
        %v2271 = vmax.f32 %v2270, %v2161
        %v2272 = vmax.f32 %v2271, %v2169
        %v2273 = vrot.slane %v2272, 4
        %v2274 = vmax.f32 %v2272, %v2273
        %v2275 = vrot.slane %v2274, 2
        %v2276 = vmax.f32 %v2274, %v2275
        %v2277 = vrot.slane %v2276, 1
        %v2278 = vmax.f32 %v2276, %v2277
        %v2279 = vmax.f32 %v2050, %v2058
        %v2280 = vmax.f32 %v2279, %v2066
        %v2281 = vmax.f32 %v2280, %v2074
        %v2282 = vmax.f32 %v2281, %v2082
        %v2283 = vmax.f32 %v2282, %v2090
        %v2284 = vmax.f32 %v2283, %v2098
        %v2285 = vmax.f32 %v2284, %v2106
        %v2286 = vmax.f32 %v2285, %v2114
        %v2287 = vmax.f32 %v2286, %v2122
        %v2288 = vmax.f32 %v2287, %v2130
        %v2289 = vmax.f32 %v2288, %v2138
        %v2290 = vmax.f32 %v2289, %v2146
        %v2291 = vmax.f32 %v2290, %v2154
        %v2292 = vmax.f32 %v2291, %v2162
        %v2293 = vmax.f32 %v2292, %v2170
        %v2294 = vrot.slane %v2293, 4
        %v2295 = vmax.f32 %v2293, %v2294
        %v2296 = vrot.slane %v2295, 2
        %v2297 = vmax.f32 %v2295, %v2296
        %v2298 = vrot.slane %v2297, 1
        %v2299 = vmax.f32 %v2297, %v2298
        %v2300 = vmax.f32 %v2051, %v2059
        %v2301 = vmax.f32 %v2300, %v2067
        %v2302 = vmax.f32 %v2301, %v2075
        %v2303 = vmax.f32 %v2302, %v2083
        %v2304 = vmax.f32 %v2303, %v2091
        %v2305 = vmax.f32 %v2304, %v2099
        %v2306 = vmax.f32 %v2305, %v2107
        %v2307 = vmax.f32 %v2306, %v2115
        %v2308 = vmax.f32 %v2307, %v2123
        %v2309 = vmax.f32 %v2308, %v2131
        %v2310 = vmax.f32 %v2309, %v2139
        %v2311 = vmax.f32 %v2310, %v2147
        %v2312 = vmax.f32 %v2311, %v2155
        %v2313 = vmax.f32 %v2312, %v2163
        %v2314 = vmax.f32 %v2313, %v2171
        %v2315 = vrot.slane %v2314, 4
        %v2316 = vmax.f32 %v2314, %v2315
        %v2317 = vrot.slane %v2316, 2
        %v2318 = vmax.f32 %v2316, %v2317
        %v2319 = vrot.slane %v2318, 1
        %v2320 = vmax.f32 %v2318, %v2319
        %v2321 = vmax.f32 %v2052, %v2060
        %v2322 = vmax.f32 %v2321, %v2068
        %v2323 = vmax.f32 %v2322, %v2076
        %v2324 = vmax.f32 %v2323, %v2084
        %v2325 = vmax.f32 %v2324, %v2092
        %v2326 = vmax.f32 %v2325, %v2100
        %v2327 = vmax.f32 %v2326, %v2108
        %v2328 = vmax.f32 %v2327, %v2116
        %v2329 = vmax.f32 %v2328, %v2124
        %v2330 = vmax.f32 %v2329, %v2132
        %v2331 = vmax.f32 %v2330, %v2140
        %v2332 = vmax.f32 %v2331, %v2148
        %v2333 = vmax.f32 %v2332, %v2156
        %v2334 = vmax.f32 %v2333, %v2164
        %v2335 = vmax.f32 %v2334, %v2172
        %v2336 = vrot.slane %v2335, 4
        %v2337 = vmax.f32 %v2335, %v2336
        %v2338 = vrot.slane %v2337, 2
        %v2339 = vmax.f32 %v2337, %v2338
        %v2340 = vrot.slane %v2339, 1
        %v2341 = vmax.f32 %v2339, %v2340
        %v2350 = vcombine.low %v2194, %v2215
        %v2351 = vcombine.low %v2236, %v2257
        %v2352 = vcombine.low %v2278, %v2299
        %v2353 = vcombine.low %v2320, %v2341
        %v2355 = vunpack.c.l.s4 1966171168
        %v2356 = vunpack.c.0.s8 %v2355
        %v2357 = vlaneseq
        %v2358 = vshrl.u32 %v2357, 7
        %v2359 = vsub.s32 %v2356, %v2358
        %v2360 = vrot.slane %v2350, %v2359
        %v2362 = vunpack.c.l.s4 1966171168
        %v2363 = vunpack.c.0.s8 %v2362
        %v2364 = vlaneseq
        %v2365 = vshrl.u32 %v2364, 7
        %v2366 = vsub.s32 %v2363, %v2365
        %v2367 = vrot.slane %v2351, %v2366
        %v2369 = vunpack.c.l.s4 1966171168
        %v2370 = vunpack.c.0.s8 %v2369
        %v2371 = vlaneseq
        %v2372 = vshrl.u32 %v2371, 7
        %v2373 = vsub.s32 %v2370, %v2372
        %v2374 = vrot.slane %v2352, %v2373
        %v2376 = vunpack.c.l.s4 1966171168
        %v2377 = vunpack.c.0.s8 %v2376
        %v2378 = vlaneseq
        %v2379 = vshrl.u32 %v2378, 7
        %v2380 = vsub.s32 %v2377, %v2379
        %v2381 = vrot.slane %v2353, %v2380
        %v2382 = vcombine.low %v2360, %v2367
        %v2383 = vcombine.low %v2374, %v2381
        %v2385 = vunpack.c.l.s4 1966171168
        %v2386 = vunpack.c.0.s8 %v2385
        %v2387 = vlaneseq
        %v2388 = vshrl.u32 %v2387, 7
        %v2389 = vsub.s32 %v2386, %v2388
        %v2390 = vrot.slane %v2382, %v2389
        %v2392 = vunpack.c.l.s4 1966171168
        %v2393 = vunpack.c.0.s8 %v2392
        %v2394 = vlaneseq
        %v2395 = vshrl.u32 %v2394, 7
        %v2396 = vsub.s32 %v2393, %v2395
        %v2397 = vrot.slane %v2383, %v2396
        %v2398 = vcombine.low %v2390, %v2397
        %v2400 = vmax.f32 %v2173, %v2398
        %2401 = vst [vmem:[%s375] sm:$0xff] %v2400
        %s2402 = sand.u32 %s261, 1
        %s2403 = scalar_lea.sflag [#allocation3], %s2402
        %s2404 = sand.u32 %s261, 1
        %s2405 = smul.addr %s2404, 8
        %s2406 = scalar_lea.vmem [#allocation2], %s2405
        // Predicated region
        $region65: #{tpu_custom_call.1} parent=59 // pred_check
          %p2407 = pneg %p271
        $region66: #{tpu_custom_call.1} parent=59 // pred_check_branch
          %2409 = sbr.rel (%p2407) target = $region68
        $region67: #{tpu_custom_call.1} parent=59 // pred_region
          %s2411 = ssub.s32 128, 128
          %2412 = vsyncadd %s2403, %s2411
          %s2413 = smul.addr %s28, 8
          %s2414 = smul.addr %s2413, 16
          %s2415 = scalar_lea.hbm %s10, %s2414
          %s2417 = sshll.u32 %s2406, 4
          %s2418 = int_to_ptr.vmem [resolvable:$true] %s2417
          %2420 = dma.vmem_to_hbm [thread:$0]  %s2418, 128, %s2415, %s2403
        $region68: #{tpu_custom_call.1} parent=59 // pred_fallthru
          _
      $region60: #{tpu_custom_call.1} parent=5 // pred_fallthru
        _
      %p2421 = scmp.le.s32.totalorder 2, %s19
      // Predicated region
      $region69: #{tpu_custom_call.1} parent=5 // pred_check
        %p2422 = pneg %p2421
      $region70: #{tpu_custom_call.1} parent=5 // pred_check_branch
        %2424 = sbr.rel (%p2422) target = $region72
      $region71: #{tpu_custom_call.1} parent=5 // pred_region
        %s2425 = ssub.s32 %s19, 2
        // Predicated region
        $region73: #{tpu_custom_call.1} parent=71 // pred_check
          %p2426 = pneg %p277
        $region74: #{tpu_custom_call.1} parent=71 // pred_check_branch
          %2428 = sbr.rel (%p2426) target = $region76
        $region75: #{tpu_custom_call.1} parent=71 // pred_region
          %s2429 = sand.u32 %s262, 1
          %s2430 = scalar_lea.sflag [#allocation3], %s2429
          %s2431 = sand.u32 %s262, 1
          %s2432 = smul.addr %s2431, 8
          %s2433 = scalar_lea.vmem [#allocation2], %s2432
          %2434 = dma.done %s2430, 128
        $region76: #{tpu_custom_call.1} parent=71 // pred_fallthru
          _
      $region72: #{tpu_custom_call.1} parent=5 // pred_fallthru
        _
    $region6: #{tpu_custom_call.1} parent=1 // loop_footer
      %s23 = sadd.s32 1, %s19
    $region7: #{tpu_custom_call.1} parent=1 // loop_footer_branch
      %18 = sbr.rel target = $region3
    $region8: #{tpu_custom_call.1} parent=1 // loop_exit
      _
    %2435 = vsyncpa [#allocation3], 1
    %s2436 = scalar_lea.sflag [#allocation3], 1
    %2437 = vsyncpa %s2436, 1

</llo_original>
